<compile_context>
chip_gen: v7x
topology: tpu7x:2x2x1
jax: 0.10.0
libtpu: 0.0.40
codegen_flags: <defaults>
</compile_context>

<pallas_src>
import jax
import jax.numpy as jnp
from jax.experimental import pallas as pl
from jax.experimental.pallas import tpu as pltpu

EXPANSION = 4
BN_EPS = 1e-5


def _bottleneck_kernel(x_ref, w1_ref, b1_ref, w2_ref, b2_ref, w3_ref, b3_ref,
                       out_ref, pad_ref):
    """One grid step processes one image (NHWC).

    x_ref  : (1, H, W, Cin)   bf16, Cin = planes * 4
    w1_ref : (Cin, P)         bf16, BN1 scale folded in
    b1_ref : (1, P)           f32 folded BN1 bias
    w2_ref : (9*P, P)         bf16, BN2 scale folded in, tap index = dy*3 + dx
    b2_ref : (1, P)           f32 folded BN2 bias
    w3_ref : (P, Cin)         bf16, BN3 scale folded in
    b3_ref : (1, Cin)         f32 folded BN3 bias
    out_ref: (1, H, W, Cin)   f32
    pad_ref: ((H+2)*W, P)     f32 VMEM scratch (conv2 input, H-padded, flat)
    """
    _, H, W, Cin = x_ref.shape
    P = w1_ref.shape[1]
    HW = H * W

    x = x_ref[0]                                   # (H, W, Cin) bf16
    x2d = x.reshape(HW, Cin)

    # ---- conv1 (1x1, BN1 scale folded) + bias + relu --------------------
    t = jnp.dot(x2d, w1_ref[...], preferred_element_type=jnp.float32)
    t = jnp.maximum(t + b1_ref[...], 0.0)          # (HW, P) f32

    # ---- conv2 (3x3, pad=1) as a single im2col matmul -------------------
    # Flat H-padded scratch: the two halo "image rows" (W scratch rows each)
    # are tiny, so zero them every step (cheap and megacore-safe); the
    # interior is fully rewritten.  All slice starts are multiples of W
    # (W % 8 == 0), so every scratch access is sublane-aligned.
    zero_row = jnp.zeros((W, P), jnp.float32)
    pad_ref[0:W] = zero_row
    pad_ref[(H + 1) * W:(H + 2) * W] = zero_row
    pad_ref[W:(H + 1) * W] = t                     # interior rows 1..H

    # Column index of every flat row, for masking the +/-1 W-shift edges.
    col = jax.lax.broadcasted_iota(jnp.int32, (H, W, P), 1).reshape(HW, P)
    valid_left = col >= 1                          # tap dx == 0 reads x-1
    valid_right = col < (W - 1)                    # tap dx == 2 reads x+1

    taps = []
    for dy in range(3):
        rows = pad_ref[dy * W:dy * W + HW]         # (HW, P) f32, aligned slice
        for dx in range(3):
            if dx == 1:
                taps.append(rows)
            elif dx == 0:
                # Need rows[r-1]; roll down by 1 (XLU) and zero column 0.
                shifted = pltpu.roll(rows, shift=1, axis=0)
                taps.append(jnp.where(valid_left, shifted, 0.0))
            else:
                # Need rows[r+1]; roll up by 1 and zero column W-1.
                shifted = pltpu.roll(rows, shift=HW - 1, axis=0)
                taps.append(jnp.where(valid_right, shifted, 0.0))
    im2col = jnp.concatenate(taps, axis=-1).astype(w2_ref.dtype)  # (HW, 9P)

    t = jnp.dot(im2col, w2_ref[...], preferred_element_type=jnp.float32)
    t = jnp.maximum(t + b2_ref[...], 0.0)          # (HW, P) f32

    # ---- conv3 (1x1, BN3 scale folded) + bias + residual + relu ---------
    t = jnp.dot(t.astype(w3_ref.dtype), w3_ref[...],
                preferred_element_type=jnp.float32)
    t = t + b3_ref[...] + x2d.astype(jnp.float32)
    out_ref[0] = jnp.maximum(t, 0.0).reshape(H, W, Cin).astype(out_ref.dtype)


def _fold_bn(gamma, beta, mean, var):
    scale = gamma / jnp.sqrt(var + BN_EPS)
    bias = beta - mean * scale
    return scale, bias                              # (C,), (C,)


def bottleneck_forward(x_nchw, params):
    """x_nchw: (N, C, H, W) f32 with C == planes * 4 (stride=1, no downsample)."""
    N, C, H, W = x_nchw.shape
    P = params["w1"].shape[1]
    assert C == P * EXPANSION
    # Reshapes / flat-scratch slices in the kernel stay layout-aligned only
    # when W is a multiple of the sublane tile (8; 16 preferred for bf16).
    assert W % 8 == 0

    # NHWC + bf16 MXU operands (also halves input HBM traffic).
    x = jnp.transpose(x_nchw, (0, 2, 3, 1)).astype(jnp.bfloat16)

    s1, b1 = _fold_bn(params["g1"], params["be1"], params["m1"], params["v1"])
    s2, b2 = _fold_bn(params["g2"], params["be2"], params["m2"], params["v2"])
    s3, b3 = _fold_bn(params["g3"], params["be3"], params["m3"], params["v3"])

    # Fold BN scales into the conv weights (per output channel), cast to bf16.
    w1 = (params["w1"] * s1[None, :]).astype(jnp.bfloat16)               # (C, P)
    w2 = (params["w2"] * s2[None, None, :]).reshape(9 * P, P).astype(jnp.bfloat16)
    w3 = (params["w3"] * s3[None, :]).astype(jnp.bfloat16)               # (P, C)
    b1 = b1[None, :].astype(jnp.float32)
    b2 = b2[None, :].astype(jnp.float32)
    b3 = b3[None, :].astype(jnp.float32)

    full = lambda a: pl.BlockSpec(a.shape, lambda n: (0,) * a.ndim)

    flops = 2 * N * H * W * (C * P + 9 * P * P + P * C)
    bytes_accessed = (x.size * 2 + N * H * W * C * 4
                      + (w1.size + w2.size + w3.size) * 2
                      + (b1.size + b2.size + b3.size) * 4)

    out = pl.pallas_call(
        _bottleneck_kernel,
        out_shape=jax.ShapeDtypeStruct((N, H, W, C), jnp.float32),
        grid=(N,),
        in_specs=[
            pl.BlockSpec((1, H, W, C), lambda n: (n, 0, 0, 0)),   # x
            full(w1), full(b1), full(w2), full(b2), full(w3), full(b3),
        ],
        out_specs=pl.BlockSpec((1, H, W, C), lambda n: (n, 0, 0, 0)),
        scratch_shapes=[pltpu.VMEM(((H + 2) * W, P), jnp.float32)],
        compiler_params=pltpu.CompilerParams(
            dimension_semantics=("parallel",),
            # Explicit budget: fits v7x's 64 MiB physical / 32 MiB scoped
            # default as well as v5e/v6e (128 MiB).
            vmem_limit_bytes=32 * 1024 * 1024),
        cost_estimate=pl.CostEstimate(
            flops=flops, transcendentals=0, bytes_accessed=bytes_accessed),
    )(x, w1, b1, w2, b2, w3, b3)

    # TODO(synk): for full-size ResNet feature maps (e.g. 56x56), add a
    # row-tile grid axis with a 1-row halo so per-step intermediates shrink.
    return jnp.transpose(out, (0, 3, 1, 2))         # -> NCHW


def init_params(key, inplanes, planes):
    """Deterministic synthetic parameters (weights already in matmul layout)."""
    ks = jax.random.split(key, 12)
    cout3 = planes * EXPANSION

    def w(k, shape, fan_in):
        return jax.random.normal(k, shape, jnp.float32) / (fan_in ** 0.5)

    return {
        # conv weights: (Cin, Cout) / (tap, Cin, Cout), tap = dy*3 + dx
        "w1": w(ks[0], (inplanes, planes), inplanes),
        "w2": w(ks[1], (9, planes, planes), 9 * planes),
        "w3": w(ks[2], (planes, cout3), planes),
        # bn1
        "g1": jax.random.uniform(ks[3], (planes,), jnp.float32, 0.5, 1.5),
        "be1": jax.random.normal(ks[4], (planes,), jnp.float32) * 0.1,
        "m1": jax.random.normal(ks[5], (planes,), jnp.float32) * 0.1,
        "v1": jax.random.uniform(ks[6], (planes,), jnp.float32, 0.5, 1.5),
        # bn2
        "g2": jax.random.uniform(ks[7], (planes,), jnp.float32, 0.5, 1.5),
        "be2": jax.random.normal(ks[8], (planes,), jnp.float32) * 0.1,
        "m2": jax.random.normal(ks[9], (planes,), jnp.float32) * 0.1,
        "v2": jax.random.uniform(ks[10], (planes,), jnp.float32, 0.5, 1.5),
        # bn3
        "g3": jax.random.uniform(ks[11], (cout3,), jnp.float32, 0.5, 1.5),
        "be3": jnp.zeros((cout3,), jnp.float32),
        "m3": jnp.zeros((cout3,), jnp.float32),
        "v3": jnp.ones((cout3,), jnp.float32),
    }


def _reference(x_nchw, params):
    """Independent pure-JAX check (lax.conv, NHWC) mirroring the kernel's
    numerics: BN scales folded into bf16 weights, bf16 conv operands,
    f32 accumulation, f32 bias / relu / residual."""
    P = params["w1"].shape[1]
    s1, b1 = _fold_bn(params["g1"], params["be1"], params["m1"], params["v1"])
    s2, b2 = _fold_bn(params["g2"], params["be2"], params["m2"], params["v2"])
    s3, b3 = _fold_bn(params["g3"], params["be3"], params["m3"], params["v3"])

    x = jnp.transpose(x_nchw, (0, 2, 3, 1)).astype(jnp.bfloat16)

    w1 = (params["w1"] * s1[None, :]).astype(jnp.bfloat16)
    w2 = (params["w2"] * s2[None, None, :]).astype(jnp.bfloat16)
    w3 = (params["w3"] * s3[None, :]).astype(jnp.bfloat16)

    def conv(inp, w_hwio, pad):
        return jax.lax.conv_general_dilated(
            inp, w_hwio, (1, 1), pad,
            dimension_numbers=("NHWC", "HWIO", "NHWC"),
            preferred_element_type=jnp.float32)

    t = jax.nn.relu(conv(x, w1[None, None], "VALID") + b1)
    t = jax.nn.relu(conv(t.astype(jnp.bfloat16),
                         w2.reshape(3, 3, P, P), "SAME") + b2)
    t = conv(t.astype(jnp.bfloat16), w3[None, None], "VALID") + b3
    t = jax.nn.relu(t + x.astype(jnp.float32))
    return jnp.transpose(t, (0, 3, 1, 2))


if __name__ == "__main__":
    key = jax.random.PRNGKey(0)
    k_x, k_p = jax.random.split(key)

    planes = 32
    inplanes = planes * EXPANSION      # 128 -> residual add needs no downsample
    N, H, W = 2, 16, 16

    x = jax.random.normal(k_x, (N, inplanes, H, W), jnp.float32)
    params = init_params(k_p, inplanes, planes)

    out = jax.block_until_ready(bottleneck_forward(x, params))
    ref = _reference(x, params)

    assert out.shape == (N, inplanes, H, W)
    err = float(jnp.max(jnp.abs(out - ref)))
    assert err < 3e-2, f"mismatch vs reference: max |diff| = {err}"

    print("KERNEL_OK")
</pallas_src>

<mosaic_0001>
module attributes {stable_mosaic.version = 11 : i64} {
  func.func @_bottleneck_kernel(%arg0: i32, %arg1: memref<1x16x16x128xbf16, #tpu.memory_space<vmem>>, %arg2: memref<128x32xbf16, #tpu.memory_space<vmem>>, %arg3: memref<1x32xf32, #tpu.memory_space<vmem>>, %arg4: memref<288x32xbf16, #tpu.memory_space<vmem>>, %arg5: memref<1x32xf32, #tpu.memory_space<vmem>>, %arg6: memref<32x128xbf16, #tpu.memory_space<vmem>>, %arg7: memref<1x128xf32, #tpu.memory_space<vmem>>, %arg8: memref<1x16x16x128xf32, #tpu.memory_space<vmem>>, %arg9: memref<288x32xf32, #tpu.memory_space<vmem>>) attributes {dimension_semantics = [#tpu.dimension_semantics<parallel>], iteration_bounds = array<i64: 2>, scalar_prefetch = 0 : i64, scratch_operands = 1 : i64, tpu.core_type = #tpu.core_type<tc>, window_params = [{transform_indices = @transform_0, window_bounds = array<i64: 1, 16, 16, 128>}, {pipeline_mode = #tpu.pipeline_mode<synchronous>, transform_indices = @transform_1, window_bounds = array<i64: 128, 32>}, {pipeline_mode = #tpu.pipeline_mode<synchronous>, transform_indices = @transform_2, window_bounds = array<i64: 1, 32>}, {pipeline_mode = #tpu.pipeline_mode<synchronous>, transform_indices = @transform_3, window_bounds = array<i64: 288, 32>}, {pipeline_mode = #tpu.pipeline_mode<synchronous>, transform_indices = @transform_4, window_bounds = array<i64: 1, 32>}, {pipeline_mode = #tpu.pipeline_mode<synchronous>, transform_indices = @transform_5, window_bounds = array<i64: 32, 128>}, {pipeline_mode = #tpu.pipeline_mode<synchronous>, transform_indices = @transform_6, window_bounds = array<i64: 1, 128>}, {transform_indices = @transform_7, window_bounds = array<i64: 1, 16, 16, 128>}]} {
    %c0 = arith.constant 0 : index
    %c0_0 = arith.constant 0 : index
    %c0_1 = arith.constant 0 : index
    %c0_2 = arith.constant 0 : index
    %0 = vector.load %arg1[%c0, %c0_0, %c0_1, %c0_2] : memref<1x16x16x128xbf16, #tpu.memory_space<vmem>>, vector<1x16x16x128xbf16>
    %1 = vector.shape_cast %0 : vector<1x16x16x128xbf16> to vector<16x16x128xbf16>
    %2 = vector.shape_cast %1 : vector<16x16x128xbf16> to vector<256x128xbf16>
    %c0_3 = arith.constant 0 : index
    %c0_4 = arith.constant 0 : index
    %3 = vector.load %arg2[%c0_3, %c0_4] : memref<128x32xbf16, #tpu.memory_space<vmem>>, vector<128x32xbf16>
    %cst = arith.constant dense<0.000000e+00> : vector<256x32xf32>
    %4 = tpu.matmul %2, %3, %cst {dimension_numbers = #tpu.dot_dimension_numbers<[1], [0], [0], [1], [0, 0, 1, 1], [], []>} : vector<256x128xbf16>, vector<128x32xbf16>, vector<256x32xf32> -> vector<256x32xf32>
    %c0_5 = arith.constant 0 : index
    %c0_6 = arith.constant 0 : index
    %5 = vector.load %arg3[%c0_5, %c0_6] : memref<1x32xf32, #tpu.memory_space<vmem>>, vector<1x32xf32>
    %6 = vector.broadcast %5 : vector<1x32xf32> to vector<256x32xf32>
    %7 = arith.addf %4, %6 : vector<256x32xf32>
    %cst_7 = arith.constant 0.000000e+00 : f32
    %8 = vector.broadcast %cst_7 : f32 to vector<256x32xf32>
    %9 = arith.maximumf %7, %8 : vector<256x32xf32>
    %cst_8 = arith.constant 0.000000e+00 : f32
    %10 = vector.broadcast %cst_8 : f32 to vector<16x32xf32>
    %c0_9 = arith.constant 0 : index
    %c0_10 = arith.constant 0 : index
    %11 = vector.load %arg9[%c0_9, %c0_10] : memref<288x32xf32, #tpu.memory_space<vmem>>, vector<16x32xf32>
    tpu.vector_store %arg9[%c0_9, %c0_10], %10 {strides = array<i32>} : memref<288x32xf32, #tpu.memory_space<vmem>>, vector<16x32xf32>,
    %c272 = arith.constant 272 : index
    %c0_11 = arith.constant 0 : index
    %12 = vector.load %arg9[%c272, %c0_11] : memref<288x32xf32, #tpu.memory_space<vmem>>, vector<16x32xf32>
    tpu.vector_store %arg9[%c272, %c0_11], %10 {strides = array<i32>} : memref<288x32xf32, #tpu.memory_space<vmem>>, vector<16x32xf32>,
    %c16 = arith.constant 16 : index
    %c0_12 = arith.constant 0 : index
    %13 = vector.load %arg9[%c16, %c0_12] : memref<288x32xf32, #tpu.memory_space<vmem>>, vector<256x32xf32>
    tpu.vector_store %arg9[%c16, %c0_12], %9 {strides = array<i32>} : memref<288x32xf32, #tpu.memory_space<vmem>>, vector<256x32xf32>,
    %14 = tpu.iota {dimensions = array<i32: 1>} : vector<16x16x32xi32>
    %15 = vector.shape_cast %14 : vector<16x16x32xi32> to vector<256x32xi32>
    %c1_i32 = arith.constant 1 : i32
    %16 = vector.broadcast %c1_i32 : i32 to vector<256x32xi32>
    %17 = arith.cmpi sge, %15, %16 : vector<256x32xi32>
    %c15_i32 = arith.constant 15 : i32
    %18 = vector.broadcast %c15_i32 : i32 to vector<256x32xi32>
    %19 = arith.cmpi slt, %15, %18 : vector<256x32xi32>
    %c0_13 = arith.constant 0 : index
    %c0_14 = arith.constant 0 : index
    %20 = vector.load %arg9[%c0_13, %c0_14] : memref<288x32xf32, #tpu.memory_space<vmem>>, vector<256x32xf32>
    %c1_i32_15 = arith.constant 1 : i32
    %21 = tpu.dynamic_rotate %20 by %c1_i32_15 dim 0 : vector<256x32xf32>, i32 -> vector<256x32xf32>
    %cst_16 = arith.constant 0.000000e+00 : f32
    %22 = vector.broadcast %cst_16 : f32 to vector<256x32xf32>
    %23 = arith.select %17, %21, %22 : vector<256x32xi1>, vector<256x32xf32>
    %c255_i32 = arith.constant 255 : i32
    %24 = tpu.dynamic_rotate %20 by %c255_i32 dim 0 : vector<256x32xf32>, i32 -> vector<256x32xf32>
    %cst_17 = arith.constant 0.000000e+00 : f32
    %25 = vector.broadcast %cst_17 : f32 to vector<256x32xf32>
    %26 = arith.select %19, %24, %25 : vector<256x32xi1>, vector<256x32xf32>
    %c16_18 = arith.constant 16 : index
    %c0_19 = arith.constant 0 : index
    %27 = vector.load %arg9[%c16_18, %c0_19] : memref<288x32xf32, #tpu.memory_space<vmem>>, vector<256x32xf32>
    %c1_i32_20 = arith.constant 1 : i32
    %28 = tpu.dynamic_rotate %27 by %c1_i32_20 dim 0 : vector<256x32xf32>, i32 -> vector<256x32xf32>
    %cst_21 = arith.constant 0.000000e+00 : f32
    %29 = vector.broadcast %cst_21 : f32 to vector<256x32xf32>
    %30 = arith.select %17, %28, %29 : vector<256x32xi1>, vector<256x32xf32>
    %c255_i32_22 = arith.constant 255 : i32
    %31 = tpu.dynamic_rotate %27 by %c255_i32_22 dim 0 : vector<256x32xf32>, i32 -> vector<256x32xf32>
    %cst_23 = arith.constant 0.000000e+00 : f32
    %32 = vector.broadcast %cst_23 : f32 to vector<256x32xf32>
    %33 = arith.select %19, %31, %32 : vector<256x32xi1>, vector<256x32xf32>
    %c32 = arith.constant 32 : index
    %c0_24 = arith.constant 0 : index
    %34 = vector.load %arg9[%c32, %c0_24] : memref<288x32xf32, #tpu.memory_space<vmem>>, vector<256x32xf32>
    %c1_i32_25 = arith.constant 1 : i32
    %35 = tpu.dynamic_rotate %34 by %c1_i32_25 dim 0 : vector<256x32xf32>, i32 -> vector<256x32xf32>
    %cst_26 = arith.constant 0.000000e+00 : f32
    %36 = vector.broadcast %cst_26 : f32 to vector<256x32xf32>
    %37 = arith.select %17, %35, %36 : vector<256x32xi1>, vector<256x32xf32>
    %c255_i32_27 = arith.constant 255 : i32
    %38 = tpu.dynamic_rotate %34 by %c255_i32_27 dim 0 : vector<256x32xf32>, i32 -> vector<256x32xf32>
    %cst_28 = arith.constant 0.000000e+00 : f32
    %39 = vector.broadcast %cst_28 : f32 to vector<256x32xf32>
    %40 = arith.select %19, %38, %39 : vector<256x32xi1>, vector<256x32xf32>
    %41 = tpu.concatenate %23, %20, %26, %30, %27, %33, %37, %34, %40 in 1 : vector<256x32xf32>, vector<256x32xf32>, vector<256x32xf32>, vector<256x32xf32>, vector<256x32xf32>, vector<256x32xf32>, vector<256x32xf32>, vector<256x32xf32>, vector<256x32xf32> -> vector<256x288xf32>
    %42 = arith.truncf %41 : vector<256x288xf32> to vector<256x288xbf16>
    %c0_29 = arith.constant 0 : index
    %c0_30 = arith.constant 0 : index
    %43 = vector.load %arg4[%c0_29, %c0_30] : memref<288x32xbf16, #tpu.memory_space<vmem>>, vector<288x32xbf16>
    %cst_31 = arith.constant dense<0.000000e+00> : vector<256x32xf32>
    %44 = tpu.matmul %42, %43, %cst_31 {dimension_numbers = #tpu.dot_dimension_numbers<[1], [0], [0], [1], [0, 0, 1, 1], [], []>} : vector<256x288xbf16>, vector<288x32xbf16>, vector<256x32xf32> -> vector<256x32xf32>
    %c0_32 = arith.constant 0 : index
    %c0_33 = arith.constant 0 : index
    %45 = vector.load %arg5[%c0_32, %c0_33] : memref<1x32xf32, #tpu.memory_space<vmem>>, vector<1x32xf32>
    %46 = vector.broadcast %45 : vector<1x32xf32> to vector<256x32xf32>
    %47 = arith.addf %44, %46 : vector<256x32xf32>
    %cst_34 = arith.constant 0.000000e+00 : f32
    %48 = vector.broadcast %cst_34 : f32 to vector<256x32xf32>
    %49 = arith.maximumf %47, %48 : vector<256x32xf32>
    %50 = arith.truncf %49 : vector<256x32xf32> to vector<256x32xbf16>
    %c0_35 = arith.constant 0 : index
    %c0_36 = arith.constant 0 : index
    %51 = vector.load %arg6[%c0_35, %c0_36] : memref<32x128xbf16, #tpu.memory_space<vmem>>, vector<32x128xbf16>
    %cst_37 = arith.constant dense<0.000000e+00> : vector<256x128xf32>
    %52 = tpu.matmul %50, %51, %cst_37 {dimension_numbers = #tpu.dot_dimension_numbers<[1], [0], [0], [1], [0, 0, 1, 1], [], []>} : vector<256x32xbf16>, vector<32x128xbf16>, vector<256x128xf32> -> vector<256x128xf32>
    %c0_38 = arith.constant 0 : index
    %c0_39 = arith.constant 0 : index
    %53 = vector.load %arg7[%c0_38, %c0_39] : memref<1x128xf32, #tpu.memory_space<vmem>>, vector<1x128xf32>
    %54 = vector.broadcast %53 : vector<1x128xf32> to vector<256x128xf32>
    %55 = arith.addf %52, %54 : vector<256x128xf32>
    %56 = arith.extf %2 : vector<256x128xbf16> to vector<256x128xf32>
    %57 = arith.addf %55, %56 : vector<256x128xf32>
    %cst_40 = arith.constant 0.000000e+00 : f32
    %58 = vector.broadcast %cst_40 : f32 to vector<256x128xf32>
    %59 = arith.maximumf %57, %58 : vector<256x128xf32>
    %60 = vector.shape_cast %59 : vector<256x128xf32> to vector<16x16x128xf32>
    %c0_41 = arith.constant 0 : index
    %c0_42 = arith.constant 0 : index
    %c0_43 = arith.constant 0 : index
    %c0_44 = arith.constant 0 : index
    %61 = vector.load %arg8[%c0_41, %c0_42, %c0_43, %c0_44] : memref<1x16x16x128xf32, #tpu.memory_space<vmem>>, vector<1x16x16x128xf32>
    %62 = vector.shape_cast %61 : vector<1x16x16x128xf32> to vector<16x16x128xf32>
    %63 = vector.shape_cast %60 : vector<16x16x128xf32> to vector<1x16x16x128xf32>
    tpu.vector_store %arg8[%c0_41, %c0_42, %c0_43, %c0_44], %63 {strides = array<i32>} : memref<1x16x16x128xf32, #tpu.memory_space<vmem>>, vector<1x16x16x128xf32>,
    return
  }
  func.func @transform_0(%arg0: i32) -> (i32, i32, i32, i32) {
    %c0_i32 = arith.constant 0 : i32
    %c0_i32_0 = arith.constant 0 : i32
    %c0_i32_1 = arith.constant 0 : i32
    %c0_i32_2 = arith.constant 0 : i32
    return %arg0, %c0_i32, %c0_i32_0, %c0_i32_1 : i32, i32, i32, i32
  }
  func.func @transform_1(%arg0: i32) -> (i32, i32) {
    %c0_i32 = arith.constant 0 : i32
    %c0_i32_0 = arith.constant 0 : i32
    %c0_i32_1 = arith.constant 0 : i32
    return %c0_i32, %c0_i32_0 : i32, i32
  }
  func.func @transform_2(%arg0: i32) -> (i32, i32) {
    %c0_i32 = arith.constant 0 : i32
    %c0_i32_0 = arith.constant 0 : i32
    %c0_i32_1 = arith.constant 0 : i32
    return %c0_i32, %c0_i32_0 : i32, i32
  }
  func.func @transform_3(%arg0: i32) -> (i32, i32) {
    %c0_i32 = arith.constant 0 : i32
    %c0_i32_0 = arith.constant 0 : i32
    %c0_i32_1 = arith.constant 0 : i32
    return %c0_i32, %c0_i32_0 : i32, i32
  }
  func.func @transform_4(%arg0: i32) -> (i32, i32) {
    %c0_i32 = arith.constant 0 : i32
    %c0_i32_0 = arith.constant 0 : i32
    %c0_i32_1 = arith.constant 0 : i32
    return %c0_i32, %c0_i32_0 : i32, i32
  }
  func.func @transform_5(%arg0: i32) -> (i32, i32) {
    %c0_i32 = arith.constant 0 : i32
    %c0_i32_0 = arith.constant 0 : i32
    %c0_i32_1 = arith.constant 0 : i32
    return %c0_i32, %c0_i32_0 : i32, i32
  }
  func.func @transform_6(%arg0: i32) -> (i32, i32) {
    %c0_i32 = arith.constant 0 : i32
    %c0_i32_0 = arith.constant 0 : i32
    %c0_i32_1 = arith.constant 0 : i32
    return %c0_i32, %c0_i32_0 : i32, i32
  }
  func.func @transform_7(%arg0: i32) -> (i32, i32, i32, i32) {
    %c0_i32 = arith.constant 0 : i32
    %c0_i32_0 = arith.constant 0 : i32
    %c0_i32_1 = arith.constant 0 : i32
    %c0_i32_2 = arith.constant 0 : i32
    return %arg0, %c0_i32, %c0_i32_0, %c0_i32_1 : i32, i32, i32, i32
  }
}

</mosaic_0001>

<llo_original>
// kernel: tpu_custom_call.1
$region0: #{tpu_custom_call.1}
  #allocation0 [shape = 'u32[]', space=smem, size = 0x4, offset = 0x4, fixed_abs, tag = 'smem constant byte address 0x4 - core index']
  #allocation1 [shape = 'u32[144,128]{1,0:T(1,128)}', space=vmem, size = 0x12000, scoped, tag = 'internal scratch']
  #allocation2 [shape = 'f32[288,32]{1,0:T(8,128)}', space=vmem, size = 0x24000, scoped, tag = 'scratch operand']
  %s0 = inlined_call_operand.vmem [shape: bf16[2,16,16,128], index: 0, kind: input, shape index: {}]
  %s1 = inlined_call_operand.vmem [shape: bf16[128,32], index: 1, kind: input, shape index: {}]
  %s2 = inlined_call_operand.vmem [shape: f32[1,32], index: 2, kind: input, shape index: {}]
  %s3 = inlined_call_operand.vmem [shape: bf16[288,32], index: 3, kind: input, shape index: {}]
  %s4 = inlined_call_operand.vmem [shape: f32[1,32], index: 4, kind: input, shape index: {}]
  %s5 = inlined_call_operand.vmem [shape: bf16[32,128], index: 5, kind: input, shape index: {}]
  %s6 = inlined_call_operand.vmem [shape: f32[1,128], index: 6, kind: input, shape index: {}]
  %s7 = inlined_call_operand.hbm [shape: f32[2,16,16,128], index: 7, kind: output, shape index: {}]
  %s8 = sld [smem:[#allocation0]]
  $region61: #{tpu_custom_call.1} parent=0
    _
  %s10 = ssub.s32 1, %s8
  %s11 = scalar_select 0, %s10, %s8
  $region1: #{tpu_custom_call.1} parent=0
    #allocation3 [shape = 'u8[262144]{0}', space=vmem, size = 0x40000, scoped, tag = 'output window, operand 0']
    #allocation4 [shape = 's32[2]{0}', space=sflag, size = 0x8, scoped, tag = 'scoped memory for tpu_custom_call.1']
    %12 = vsyncpa [#allocation4], 0
    %s13 = scalar_lea.sflag [#allocation4], 1
    %14 = vsyncpa %s13, 0
    loop: start=0, step=1, limit=4
    $region2: #{tpu_custom_call.1} parent=1 // loop_pre_header
      _
    $region3: #{tpu_custom_call.1} parent=1 // loop_header
      %s16 = sphi 0, %s20
      %p17 = scmp.ge.s32.totalorder %s16, 4
      %s26 = sphi 0, %s28
      %s29 = sphi 0, %s26
      %s30 = sphi 0, %s29
      %s46 = sphi 0, %s30
      %s50 = sphi 0, %s50
      %s52 = sphi 0, %s50
      %s53 = sphi 0, %s52
      %s67 = sphi 0, %s53
      %s71 = sphi 0, %s71
      %s73 = sphi 0, %s71
      %s74 = sphi 0, %s73
      %s88 = sphi 0, %s74
      %s92 = sphi 0, %s92
      %s94 = sphi 0, %s92
      %s95 = sphi 0, %s94
      %s109 = sphi 0, %s95
      %s113 = sphi 0, %s113
      %s115 = sphi 0, %s113
      %s116 = sphi 0, %s115
      %s130 = sphi 0, %s116
      %s134 = sphi 0, %s134
      %s136 = sphi 0, %s134
      %s137 = sphi 0, %s136
      %s151 = sphi 0, %s137
      %s155 = sphi 0, %s155
      %s157 = sphi 0, %s155
      %s158 = sphi 0, %s157
      %s172 = sphi 0, %s158
      %s178 = sphi 0, %s180
      %s181 = sphi 0, %s178
      %s182 = sphi 0, %s181
      %s198 = sphi 0, %s182
    $region4: #{tpu_custom_call.1} parent=1 // loop_header_branch
      %19 = sbr.rel (%p17) target = $region8
    $region5: #{tpu_custom_call.1} parent=1 // loop_body
      %s21 = ssub.s32 %s16, 1
      %s22 = ssub.s32 %s16, 2
      %s23 = sadd.s32 %s16, 1
      %s24 = ssub.s32 %s16, %s23
      %p25 = scmp.eq.s32.totalorder %s24, 0
      %s27 = sadd.s32 %s26, 1
      %s28 = scalar_select %p25, %s26, %s27
      %p31 = pneg %p25
      %p32 = scmp.eq.s32.totalorder %s16, 1
      %p33 = por %p31, %p32
      %p34 = scmp.ne.s32.totalorder %s26, %s29
      %p35 = scmp.eq.s32.totalorder %s16, 0
      %p36 = por %p34, %p35
      %p37 = scmp.ne.s32.totalorder %s26, %s29
      %p38 = scmp.eq.s32.totalorder %s21, 1
      %p39 = por %p37, %p38
      %p40 = scmp.ne.s32.totalorder %s29, %s30
      %p41 = scmp.eq.s32.totalorder %s21, 0
      %p42 = por %p40, %p41
      %p43 = scmp.ne.s32.totalorder %s29, %s30
      %p44 = scmp.eq.s32.totalorder %s22, 1
      %p45 = por %p43, %p44
      %p47 = scmp.ne.s32.totalorder %s30, %s46
      %p48 = scmp.eq.s32.totalorder %s22, 0
      %p49 = por %p47, %p48
      %s51 = sadd.s32 %s50, 1
      %p54 = scmp.eq.s32.totalorder %s16, 1
      %p55 = scmp.ne.s32.totalorder %s50, %s52
      %p56 = scmp.eq.s32.totalorder %s16, 0
      %p57 = por %p55, %p56
      %p58 = scmp.ne.s32.totalorder %s50, %s52
      %p59 = scmp.eq.s32.totalorder %s21, 1
      %p60 = por %p58, %p59
      %p61 = scmp.ne.s32.totalorder %s52, %s53
      %p62 = scmp.eq.s32.totalorder %s21, 0
      %p63 = por %p61, %p62
      %p64 = scmp.ne.s32.totalorder %s52, %s53
      %p65 = scmp.eq.s32.totalorder %s22, 1
      %p66 = por %p64, %p65
      %p68 = scmp.ne.s32.totalorder %s53, %s67
      %p69 = scmp.eq.s32.totalorder %s22, 0
      %p70 = por %p68, %p69
      %s72 = sadd.s32 %s71, 1
      %p75 = scmp.eq.s32.totalorder %s16, 1
      %p76 = scmp.ne.s32.totalorder %s71, %s73
      %p77 = scmp.eq.s32.totalorder %s16, 0
      %p78 = por %p76, %p77
      %p79 = scmp.ne.s32.totalorder %s71, %s73
      %p80 = scmp.eq.s32.totalorder %s21, 1
      %p81 = por %p79, %p80
      %p82 = scmp.ne.s32.totalorder %s73, %s74
      %p83 = scmp.eq.s32.totalorder %s21, 0
      %p84 = por %p82, %p83
      %p85 = scmp.ne.s32.totalorder %s73, %s74
      %p86 = scmp.eq.s32.totalorder %s22, 1
      %p87 = por %p85, %p86
      %p89 = scmp.ne.s32.totalorder %s74, %s88
      %p90 = scmp.eq.s32.totalorder %s22, 0
      %p91 = por %p89, %p90
      %s93 = sadd.s32 %s92, 1
      %p96 = scmp.eq.s32.totalorder %s16, 1
      %p97 = scmp.ne.s32.totalorder %s92, %s94
      %p98 = scmp.eq.s32.totalorder %s16, 0
      %p99 = por %p97, %p98
      %p100 = scmp.ne.s32.totalorder %s92, %s94
      %p101 = scmp.eq.s32.totalorder %s21, 1
      %p102 = por %p100, %p101
      %p103 = scmp.ne.s32.totalorder %s94, %s95
      %p104 = scmp.eq.s32.totalorder %s21, 0
      %p105 = por %p103, %p104
      %p106 = scmp.ne.s32.totalorder %s94, %s95
      %p107 = scmp.eq.s32.totalorder %s22, 1
      %p108 = por %p106, %p107
      %p110 = scmp.ne.s32.totalorder %s95, %s109
      %p111 = scmp.eq.s32.totalorder %s22, 0
      %p112 = por %p110, %p111
      %s114 = sadd.s32 %s113, 1
      %p117 = scmp.eq.s32.totalorder %s16, 1
      %p118 = scmp.ne.s32.totalorder %s113, %s115
      %p119 = scmp.eq.s32.totalorder %s16, 0
      %p120 = por %p118, %p119
      %p121 = scmp.ne.s32.totalorder %s113, %s115
      %p122 = scmp.eq.s32.totalorder %s21, 1
      %p123 = por %p121, %p122
      %p124 = scmp.ne.s32.totalorder %s115, %s116
      %p125 = scmp.eq.s32.totalorder %s21, 0
      %p126 = por %p124, %p125
      %p127 = scmp.ne.s32.totalorder %s115, %s116
      %p128 = scmp.eq.s32.totalorder %s22, 1
      %p129 = por %p127, %p128
      %p131 = scmp.ne.s32.totalorder %s116, %s130
      %p132 = scmp.eq.s32.totalorder %s22, 0
      %p133 = por %p131, %p132
      %s135 = sadd.s32 %s134, 1
      %p138 = scmp.eq.s32.totalorder %s16, 1
      %p139 = scmp.ne.s32.totalorder %s134, %s136
      %p140 = scmp.eq.s32.totalorder %s16, 0
      %p141 = por %p139, %p140
      %p142 = scmp.ne.s32.totalorder %s134, %s136
      %p143 = scmp.eq.s32.totalorder %s21, 1
      %p144 = por %p142, %p143
      %p145 = scmp.ne.s32.totalorder %s136, %s137
      %p146 = scmp.eq.s32.totalorder %s21, 0
      %p147 = por %p145, %p146
      %p148 = scmp.ne.s32.totalorder %s136, %s137
      %p149 = scmp.eq.s32.totalorder %s22, 1
      %p150 = por %p148, %p149
      %p152 = scmp.ne.s32.totalorder %s137, %s151
      %p153 = scmp.eq.s32.totalorder %s22, 0
      %p154 = por %p152, %p153
      %s156 = sadd.s32 %s155, 1
      %p159 = scmp.eq.s32.totalorder %s16, 1
      %p160 = scmp.ne.s32.totalorder %s155, %s157
      %p161 = scmp.eq.s32.totalorder %s16, 0
      %p162 = por %p160, %p161
      %p163 = scmp.ne.s32.totalorder %s155, %s157
      %p164 = scmp.eq.s32.totalorder %s21, 1
      %p165 = por %p163, %p164
      %p166 = scmp.ne.s32.totalorder %s157, %s158
      %p167 = scmp.eq.s32.totalorder %s21, 0
      %p168 = por %p166, %p167
      %p169 = scmp.ne.s32.totalorder %s157, %s158
      %p170 = scmp.eq.s32.totalorder %s22, 1
      %p171 = por %p169, %p170
      %p173 = scmp.ne.s32.totalorder %s158, %s172
      %p174 = scmp.eq.s32.totalorder %s22, 0
      %p175 = por %p173, %p174
      %s176 = ssub.s32 %s16, %s23
      %p177 = scmp.eq.s32.totalorder %s176, 0
      %s179 = sadd.s32 %s178, 1
      %s180 = scalar_select %p177, %s178, %s179
      %p183 = pneg %p177
      %p184 = scmp.eq.s32.totalorder %s16, 1
      %p185 = por %p183, %p184
      %p186 = scmp.ne.s32.totalorder %s178, %s181
      %p187 = scmp.eq.s32.totalorder %s16, 0
      %p188 = por %p186, %p187
      %p189 = scmp.ne.s32.totalorder %s178, %s181
      %p190 = scmp.eq.s32.totalorder %s21, 1
      %p191 = por %p189, %p190
      %p192 = scmp.ne.s32.totalorder %s181, %s182
      %p193 = scmp.eq.s32.totalorder %s21, 0
      %p194 = por %p192, %p193
      %p195 = scmp.ne.s32.totalorder %s181, %s182
      %p196 = scmp.eq.s32.totalorder %s22, 1
      %p197 = por %p195, %p196
      %p199 = scmp.ne.s32.totalorder %s182, %s198
      %p200 = scmp.eq.s32.totalorder %s22, 0
      %p201 = por %p199, %p200
      %p202 = scmp.le.s32.totalorder 1, %s16
      %p203 = scmp.lt.s32.totalorder %s16, 3
      %p204 = pnand %p202, %p203
      %p205 = pneg %p204
      // Predicated region
      $region9: #{tpu_custom_call.1} parent=5 // pred_check
        _
      $region10: #{tpu_custom_call.1} parent=5 // pred_check_branch
        %207 = sbr.rel (%p204) target = $region12
      $region11: #{tpu_custom_call.1} parent=5 // pred_region
        %s208 = ssub.s32 %s16, 1
        // Predicated region
        $region13: #{tpu_custom_call.1} parent=11 // pred_check
          %p209 = pneg %p63
        $region14: #{tpu_custom_call.1} parent=11 // pred_check_branch
          %211 = sbr.rel (%p209) target = $region16
        $region15: #{tpu_custom_call.1} parent=11 // pred_region
          _
        $region16: #{tpu_custom_call.1} parent=11 // pred_fallthru
          _
        // Predicated region
        $region17: #{tpu_custom_call.1} parent=11 // pred_check
          %p212 = pneg %p84
        $region18: #{tpu_custom_call.1} parent=11 // pred_check_branch
          %214 = sbr.rel (%p212) target = $region20
        $region19: #{tpu_custom_call.1} parent=11 // pred_region
          _
        $region20: #{tpu_custom_call.1} parent=11 // pred_fallthru
          _
        // Predicated region
        $region21: #{tpu_custom_call.1} parent=11 // pred_check
          %p215 = pneg %p105
        $region22: #{tpu_custom_call.1} parent=11 // pred_check_branch
          %217 = sbr.rel (%p215) target = $region24
        $region23: #{tpu_custom_call.1} parent=11 // pred_region
          _
        $region24: #{tpu_custom_call.1} parent=11 // pred_fallthru
          _
        // Predicated region
        $region25: #{tpu_custom_call.1} parent=11 // pred_check
          %p218 = pneg %p126
        $region26: #{tpu_custom_call.1} parent=11 // pred_check_branch
          %220 = sbr.rel (%p218) target = $region28
        $region27: #{tpu_custom_call.1} parent=11 // pred_region
          _
        $region28: #{tpu_custom_call.1} parent=11 // pred_fallthru
          _
        // Predicated region
        $region29: #{tpu_custom_call.1} parent=11 // pred_check
          %p221 = pneg %p147
        $region30: #{tpu_custom_call.1} parent=11 // pred_check_branch
          %223 = sbr.rel (%p221) target = $region32
        $region31: #{tpu_custom_call.1} parent=11 // pred_region
          _
        $region32: #{tpu_custom_call.1} parent=11 // pred_fallthru
          _
        // Predicated region
        $region33: #{tpu_custom_call.1} parent=11 // pred_check
          %p224 = pneg %p168
        $region34: #{tpu_custom_call.1} parent=11 // pred_check_branch
          %226 = sbr.rel (%p224) target = $region36
        $region35: #{tpu_custom_call.1} parent=11 // pred_region
          _
        $region36: #{tpu_custom_call.1} parent=11 // pred_fallthru
          _
      $region12: #{tpu_custom_call.1} parent=5 // pred_fallthru
        _
      %p227 = scmp.lt.s32.totalorder %s16, 2
      // Predicated region
      $region37: #{tpu_custom_call.1} parent=5 // pred_check
        %p228 = pneg %p227
      $region38: #{tpu_custom_call.1} parent=5 // pred_check_branch
        %230 = sbr.rel (%p228) target = $region40
      $region39: #{tpu_custom_call.1} parent=5 // pred_region
        // Predicated region
        $region41: #{tpu_custom_call.1} parent=39 // pred_check
          %p231 = pneg %p36
        $region42: #{tpu_custom_call.1} parent=39 // pred_check_branch
          %233 = sbr.rel (%p231) target = $region44
        $region43: #{tpu_custom_call.1} parent=39 // pred_region
          %p234 = scmp.lt.s32.totalorder %s16, 1
          %s235 = scalar_select %p234, %s16, 1
          %s236 = smul.addr %s235, 32
          %s237 = smul.addr %s236, 4
          %s238 = scalar_lea.vmem %s0, %s237
        $region44: #{tpu_custom_call.1} parent=39 // pred_fallthru
          _
      $region40: #{tpu_custom_call.1} parent=5 // pred_fallthru
        _
      %p239 = scmp.le.s32.totalorder 1, %s16
      %p240 = scmp.lt.s32.totalorder %s16, 3
      %p241 = pnand %p239, %p240
      %p242 = pneg %p241
      // Predicated region
      $region45: #{tpu_custom_call.1} parent=5 // pred_check
        _
      $region46: #{tpu_custom_call.1} parent=5 // pred_check_branch
        %244 = sbr.rel (%p241) target = $region48
      $region47: #{tpu_custom_call.1} parent=5 // pred_region
        %s245 = ssub.s32 %s16, 1
        %p246 = scmp.lt.s32.totalorder %s21, 1
        %s247 = scalar_select %p246, %s21, 1
        %s248 = smul.addr %s247, 32
        %s249 = smul.addr %s248, 4
        %s250 = scalar_lea.vmem %s0, %s249
        %p251 = pneg %p42
        %p252 = pneg %p39
        %p253 = pneg %p63
        %p254 = pneg %p60
        %p255 = pneg %p84
        %p256 = pneg %p81
        %p257 = pneg %p105
        %p258 = pneg %p102
        %p259 = pneg %p126
        %p260 = pneg %p123
        %p261 = pneg %p147
        %p262 = pneg %p144
        %p263 = pneg %p168
        %p264 = pneg %p165
        %p265 = pneg %p194
        %p266 = pneg %p191
        %s267 = sand.u32 %s181, 1
        %s268 = scalar_lea.sflag [#allocation4], %s267
        %s269 = sand.u32 %s181, 1
        %s270 = smul.addr %s269, 256
        %s271 = scalar_lea.vmem [#allocation3], %s270
        %p272 = scmp.lt.s32.totalorder %s21, 1
        %s273 = scalar_select %p272, %s21, 1
        %s274 = smul.addr %s273, 32
        %s275 = smul.addr %s274, 4
        %s276 = scalar_lea.vmem %s0, %s275
        %v278 = vld [vmem:[%s276] sm:$0xf]
        %v279 = vld [vmem:[%s276 + $0x4] sm:$0xf]
        %v280 = vld [vmem:[%s276 + $0x8] sm:$0xf]
        %v281 = vld [vmem:[%s276 + $0xc] sm:$0xf]
        %v282 = vld [vmem:[%s276 + $0x10] sm:$0xf]
        %v283 = vld [vmem:[%s276 + $0x14] sm:$0xf]
        %v284 = vld [vmem:[%s276 + $0x18] sm:$0xf]
        %v285 = vld [vmem:[%s276 + $0x1c] sm:$0xf]
        %v286 = vld [vmem:[%s276 + $0x20] sm:$0xf]
        %v287 = vld [vmem:[%s276 + $0x24] sm:$0xf]
        %v288 = vld [vmem:[%s276 + $0x28] sm:$0xf]
        %v289 = vld [vmem:[%s276 + $0x2c] sm:$0xf]
        %v290 = vld [vmem:[%s276 + $0x30] sm:$0xf]
        %v291 = vld [vmem:[%s276 + $0x34] sm:$0xf]
        %v292 = vld [vmem:[%s276 + $0x38] sm:$0xf]
        %v293 = vld [vmem:[%s276 + $0x3c] sm:$0xf]
        %v294 = vld [vmem:[%s276 + $0x40] sm:$0xf]
        %v295 = vld [vmem:[%s276 + $0x44] sm:$0xf]
        %v296 = vld [vmem:[%s276 + $0x48] sm:$0xf]
        %v297 = vld [vmem:[%s276 + $0x4c] sm:$0xf]
        %v298 = vld [vmem:[%s276 + $0x50] sm:$0xf]
        %v299 = vld [vmem:[%s276 + $0x54] sm:$0xf]
        %v300 = vld [vmem:[%s276 + $0x58] sm:$0xf]
        %v301 = vld [vmem:[%s276 + $0x5c] sm:$0xf]
        %v302 = vld [vmem:[%s276 + $0x60] sm:$0xf]
        %v303 = vld [vmem:[%s276 + $0x64] sm:$0xf]
        %v304 = vld [vmem:[%s276 + $0x68] sm:$0xf]
        %v305 = vld [vmem:[%s276 + $0x6c] sm:$0xf]
        %v306 = vld [vmem:[%s276 + $0x70] sm:$0xf]
        %v307 = vld [vmem:[%s276 + $0x74] sm:$0xf]
        %v308 = vld [vmem:[%s276 + $0x78] sm:$0xf]
        %v309 = vld [vmem:[%s276 + $0x7c] sm:$0xf]
        %v310 = vld [vmem:[%s1] sm:$0xf]
        %v311 = vld [vmem:[%s1 + $0x4] sm:$0xf]
        %v312 = vld [vmem:[%s1 + $0x8] sm:$0xf]
        %v313 = vld [vmem:[%s1 + $0xc] sm:$0xf]
        %v314 = vld [vmem:[%s1 + $0x10] sm:$0xf]
        %v315 = vld [vmem:[%s1 + $0x14] sm:$0xf]
        %v316 = vld [vmem:[%s1 + $0x18] sm:$0xf]
        %v317 = vld [vmem:[%s1 + $0x1c] sm:$0xf]
        %v318 = vld [vmem:[%s1 + $0x20] sm:$0xf]
        %v319 = vld [vmem:[%s1 + $0x24] sm:$0xf]
        %v320 = vld [vmem:[%s1 + $0x28] sm:$0xf]
        %v321 = vld [vmem:[%s1 + $0x2c] sm:$0xf]
        %v322 = vld [vmem:[%s1 + $0x30] sm:$0xf]
        %v323 = vld [vmem:[%s1 + $0x34] sm:$0xf]
        %v324 = vld [vmem:[%s1 + $0x38] sm:$0xf]
        %v325 = vld [vmem:[%s1 + $0x3c] sm:$0xf]
        %v326 = vld [vmem:[%s2] sm:$0x1]
        %v328 = vlaneseq
        %v329 = vshrl.u32 %v328, 7
        %v330 = vsub.s32 0, %v329
        %v331 = vrot.slane %v326, %v330
        %v365 = vunpack.c.l.b16 %v278
        %v366 = vunpack.c.l.b16 %v279
        %v367 = vunpack.c.l.b16 %v280
        %v368 = vunpack.c.l.b16 %v281
        %v369 = vunpack.c.l.b16 %v282
        %v370 = vunpack.c.l.b16 %v283
        %v371 = vunpack.c.l.b16 %v284
        %v372 = vunpack.c.l.b16 %v285
        %v373 = vunpack.c.l.b16 %v286
        %v374 = vunpack.c.l.b16 %v287
        %v375 = vunpack.c.l.b16 %v288
        %v376 = vunpack.c.l.b16 %v289
        %v377 = vunpack.c.l.b16 %v290
        %v378 = vunpack.c.l.b16 %v291
        %v379 = vunpack.c.l.b16 %v292
        %v380 = vunpack.c.l.b16 %v293
        %v381 = vunpack.c.l.b16 %v294
        %v382 = vunpack.c.l.b16 %v295
        %v383 = vunpack.c.l.b16 %v296
        %v384 = vunpack.c.l.b16 %v297
        %v385 = vunpack.c.l.b16 %v298
        %v386 = vunpack.c.l.b16 %v299
        %v387 = vunpack.c.l.b16 %v300
        %v388 = vunpack.c.l.b16 %v301
        %v389 = vunpack.c.l.b16 %v302
        %v390 = vunpack.c.l.b16 %v303
        %v391 = vunpack.c.l.b16 %v304
        %v392 = vunpack.c.l.b16 %v305
        %v393 = vunpack.c.l.b16 %v306
        %v394 = vunpack.c.l.b16 %v307
        %v395 = vunpack.c.l.b16 %v308
        %v396 = vunpack.c.l.b16 %v309
        %v397 = vpack.c.b16 %v366, %v365
        %v398 = vpack.c.b16 %v368, %v367
        %v399 = vpack.c.b16 %v370, %v369
        %v400 = vpack.c.b16 %v372, %v371
        %v401 = vpack.c.b16 %v374, %v373
        %v402 = vpack.c.b16 %v376, %v375
        %v403 = vpack.c.b16 %v378, %v377
        %v404 = vpack.c.b16 %v380, %v379
        %v405 = vpack.c.b16 %v382, %v381
        %v406 = vpack.c.b16 %v384, %v383
        %v407 = vpack.c.b16 %v386, %v385
        %v408 = vpack.c.b16 %v388, %v387
        %v409 = vpack.c.b16 %v390, %v389
        %v410 = vpack.c.b16 %v392, %v391
        %v411 = vpack.c.b16 %v394, %v393
        %v412 = vpack.c.b16 %v396, %v395
        %v445 = vunpack.c.l.b16 %v310
        %v446 = vunpack.c.l.b16 %v311
        %v447 = vunpack.c.l.b16 %v312
        %v448 = vunpack.c.l.b16 %v313
        %v449 = vunpack.c.l.b16 %v314
        %v450 = vunpack.c.l.b16 %v315
        %v451 = vunpack.c.l.b16 %v316
        %v452 = vunpack.c.l.b16 %v317
        %v453 = vunpack.c.l.b16 %v318
        %v454 = vunpack.c.l.b16 %v319
        %v455 = vunpack.c.l.b16 %v320
        %v456 = vunpack.c.l.b16 %v321
        %v457 = vunpack.c.l.b16 %v322
        %v458 = vunpack.c.l.b16 %v323
        %v459 = vunpack.c.l.b16 %v324
        %v460 = vunpack.c.l.b16 %v325
        %v461 = vpack.c.b16 %v446, %v445
        %v462 = vpack.c.b16 %v448, %v447
        %v463 = vpack.c.b16 %v450, %v449
        %v464 = vpack.c.b16 %v452, %v451
        %v465 = vpack.c.b16 %v454, %v453
        %v466 = vpack.c.b16 %v456, %v455
        %v467 = vpack.c.b16 %v458, %v457
        %v468 = vpack.c.b16 %v460, %v459
        %477 = vmatprep.subr.bf16.mxu0 0
        %478 = vmatpush1.bf16.msra.mxu0 %v461
        %479 = vmatprep.subr.bf16.mxu0 0
        %480 = vmatpush1.bf16.msra.mxu0 %v462
        %481 = vmatprep.subr.bf16.mxu0 0
        %482 = vmatpush1.bf16.msra.mxu0 %v463
        %483 = vmatprep.subr.bf16.mxu0 0
        %484 = vmatpush1.bf16.msra.mxu0 %v464
        %485 = vmatprep.subr.bf16.mxu0 0
        %486 = vmatpush1.bf16.msra.mxu0 %v465
        %487 = vmatprep.subr.bf16.mxu0 0
        %488 = vmatpush1.bf16.msra.mxu0 %v466
        %489 = vmatprep.subr.bf16.mxu0 0
        %490 = vmatpush1.bf16.msra.mxu0 %v467
        %491 = vmatprep.subr.bf16.mxu0 0
        %492 = vmatpush1.bf16.msra.mxu0 %v468
        %493 = vmatprep.subr.bf16.mxu0 0
        %494 = vmatpush1.bf16.msra.mxu0 0
        %495 = vmatprep.subr.bf16.mxu0 0
        %496 = vmatpush1.bf16.msra.mxu0 0
        %497 = vmatprep.subr.bf16.mxu0 0
        %498 = vmatpush1.bf16.msra.mxu0 0
        %499 = vmatprep.subr.bf16.mxu0 0
        %500 = vmatpush1.bf16.msra.mxu0 0
        %501 = vmatprep.subr.bf16.mxu0 0
        %502 = vmatpush1.bf16.msra.mxu0 0
        %503 = vmatprep.subr.bf16.mxu0 0
        %504 = vmatpush1.bf16.msra.mxu0 0
        %505 = vmatprep.subr.bf16.mxu0 0
        %506 = vmatpush1.bf16.msra.mxu0 0
        %507 = vmatprep.subr.bf16.mxu0 0
        %508 = vmatpush1.bf16.msra.mxu0 0
        %509 = vmatprep.mubr.bf16.mxu0 0
        %510 = vmatmul.mubr.bf16.gmra.mrb[0].mxu0 %v397
        %v511 = vpop.f32.mrb[0].mxu0
        %v512 = vadd.f32 %v331, %v511
        %v513 = vpop.f32.mrb[0].mxu0
        %v514 = vpop.f32.mrb[0].mxu0
        %v515 = vadd.f32 %v331, %v514
        %v516 = vpop.f32.mrb[0].mxu0
        %517 = vmatprep.mubr.bf16.mxu0 0
        %518 = vmatmul.mubr.bf16.gmra.mrb[0].mxu0 %v398
        %v519 = vpop.f32.mrb[0].mxu0
        %v520 = vadd.f32 %v331, %v519
        %v521 = vpop.f32.mrb[0].mxu0
        %v522 = vpop.f32.mrb[0].mxu0
        %v523 = vadd.f32 %v331, %v522
        %v524 = vpop.f32.mrb[0].mxu0
        %525 = vmatprep.mubr.bf16.mxu0 0
        %526 = vmatmul.mubr.bf16.gmra.mrb[0].mxu0 %v399
        %v527 = vpop.f32.mrb[0].mxu0
        %v528 = vadd.f32 %v331, %v527
        %v529 = vpop.f32.mrb[0].mxu0
        %v530 = vpop.f32.mrb[0].mxu0
        %v531 = vadd.f32 %v331, %v530
        %v532 = vpop.f32.mrb[0].mxu0
        %533 = vmatprep.mubr.bf16.mxu0 0
        %534 = vmatmul.mubr.bf16.gmra.mrb[0].mxu0 %v400
        %v535 = vpop.f32.mrb[0].mxu0
        %v536 = vadd.f32 %v331, %v535
        %v537 = vpop.f32.mrb[0].mxu0
        %v538 = vpop.f32.mrb[0].mxu0
        %v539 = vadd.f32 %v331, %v538
        %v540 = vpop.f32.mrb[0].mxu0
        %541 = vmatprep.mubr.bf16.mxu0 0
        %542 = vmatmul.mubr.bf16.gmra.mrb[0].mxu0 %v401
        %v543 = vpop.f32.mrb[0].mxu0
        %v544 = vadd.f32 %v331, %v543
        %v545 = vpop.f32.mrb[0].mxu0
        %v546 = vpop.f32.mrb[0].mxu0
        %v547 = vadd.f32 %v331, %v546
        %v548 = vpop.f32.mrb[0].mxu0
        %549 = vmatprep.mubr.bf16.mxu0 0
        %550 = vmatmul.mubr.bf16.gmra.mrb[0].mxu0 %v402
        %v551 = vpop.f32.mrb[0].mxu0
        %v552 = vadd.f32 %v331, %v551
        %v553 = vpop.f32.mrb[0].mxu0
        %v554 = vpop.f32.mrb[0].mxu0
        %v555 = vadd.f32 %v331, %v554
        %v556 = vpop.f32.mrb[0].mxu0
        %557 = vmatprep.mubr.bf16.mxu0 0
        %558 = vmatmul.mubr.bf16.gmra.mrb[0].mxu0 %v403
        %v559 = vpop.f32.mrb[0].mxu0
        %v560 = vadd.f32 %v331, %v559
        %v561 = vpop.f32.mrb[0].mxu0
        %v562 = vpop.f32.mrb[0].mxu0
        %v563 = vadd.f32 %v331, %v562
        %v564 = vpop.f32.mrb[0].mxu0
        %565 = vmatprep.mubr.bf16.mxu0 0
        %566 = vmatmul.mubr.bf16.gmra.mrb[0].mxu0 %v404
        %v567 = vpop.f32.mrb[0].mxu0
        %v568 = vadd.f32 %v331, %v567
        %v569 = vpop.f32.mrb[0].mxu0
        %v570 = vpop.f32.mrb[0].mxu0
        %v571 = vadd.f32 %v331, %v570
        %v572 = vpop.f32.mrb[0].mxu0
        %573 = vmatprep.mubr.bf16.mxu0 0
        %574 = vmatmul.mubr.bf16.gmra.mrb[0].mxu0 %v405
        %v575 = vpop.f32.mrb[0].mxu0
        %v576 = vadd.f32 %v331, %v575
        %v577 = vpop.f32.mrb[0].mxu0
        %v578 = vpop.f32.mrb[0].mxu0
        %v579 = vadd.f32 %v331, %v578
        %v580 = vpop.f32.mrb[0].mxu0
        %581 = vmatprep.mubr.bf16.mxu0 0
        %582 = vmatmul.mubr.bf16.gmra.mrb[0].mxu0 %v406
        %v583 = vpop.f32.mrb[0].mxu0
        %v584 = vadd.f32 %v331, %v583
        %v585 = vpop.f32.mrb[0].mxu0
        %v586 = vpop.f32.mrb[0].mxu0
        %v587 = vadd.f32 %v331, %v586
        %v588 = vpop.f32.mrb[0].mxu0
        %589 = vmatprep.mubr.bf16.mxu0 0
        %590 = vmatmul.mubr.bf16.gmra.mrb[0].mxu0 %v407
        %v591 = vpop.f32.mrb[0].mxu0
        %v592 = vadd.f32 %v331, %v591
        %v593 = vpop.f32.mrb[0].mxu0
        %v594 = vpop.f32.mrb[0].mxu0
        %v595 = vadd.f32 %v331, %v594
        %v596 = vpop.f32.mrb[0].mxu0
        %597 = vmatprep.mubr.bf16.mxu0 0
        %598 = vmatmul.mubr.bf16.gmra.mrb[0].mxu0 %v408
        %v599 = vpop.f32.mrb[0].mxu0
        %v600 = vadd.f32 %v331, %v599
        %v601 = vpop.f32.mrb[0].mxu0
        %v602 = vpop.f32.mrb[0].mxu0
        %v603 = vadd.f32 %v331, %v602
        %v604 = vpop.f32.mrb[0].mxu0
        %605 = vmatprep.mubr.bf16.mxu0 0
        %606 = vmatmul.mubr.bf16.gmra.mrb[0].mxu0 %v409
        %v607 = vpop.f32.mrb[0].mxu0
        %v608 = vadd.f32 %v331, %v607
        %v609 = vpop.f32.mrb[0].mxu0
        %v610 = vpop.f32.mrb[0].mxu0
        %v611 = vadd.f32 %v331, %v610
        %v612 = vpop.f32.mrb[0].mxu0
        %613 = vmatprep.mubr.bf16.mxu0 0
        %614 = vmatmul.mubr.bf16.gmra.mrb[0].mxu0 %v410
        %v615 = vpop.f32.mrb[0].mxu0
        %v616 = vadd.f32 %v331, %v615
        %v617 = vpop.f32.mrb[0].mxu0
        %v618 = vpop.f32.mrb[0].mxu0
        %v619 = vadd.f32 %v331, %v618
        %v620 = vpop.f32.mrb[0].mxu0
        %621 = vmatprep.mubr.bf16.mxu0 0
        %622 = vmatmul.mubr.bf16.gmra.mrb[0].mxu0 %v411
        %v623 = vpop.f32.mrb[0].mxu0
        %v624 = vadd.f32 %v331, %v623
        %v625 = vpop.f32.mrb[0].mxu0
        %v626 = vpop.f32.mrb[0].mxu0
        %v627 = vadd.f32 %v331, %v626
        %v628 = vpop.f32.mrb[0].mxu0
        %629 = vmatprep.mubr.bf16.mxu0 0
        %630 = vmatmul.mubr.bf16.gmra.mrb[0].mxu0 %v412
        %v631 = vpop.f32.mrb[0].mxu0
        %v632 = vadd.f32 %v331, %v631
        %v633 = vpop.f32.mrb[0].mxu0
        %v634 = vpop.f32.mrb[0].mxu0
        %v635 = vadd.f32 %v331, %v634
        %v636 = vpop.f32.mrb[0].mxu0
        %637 = vdwg.mxu0
        %v638 = vmax.f32 %v512, 0.0
        %v639 = vmax.f32 %v515, 0.0
        %v640 = vmax.f32 %v520, 0.0
        %v641 = vmax.f32 %v523, 0.0
        %v642 = vmax.f32 %v528, 0.0
        %v643 = vmax.f32 %v531, 0.0
        %v644 = vmax.f32 %v536, 0.0
        %v645 = vmax.f32 %v539, 0.0
        %v646 = vmax.f32 %v544, 0.0
        %v647 = vmax.f32 %v547, 0.0
        %v648 = vmax.f32 %v552, 0.0
        %v649 = vmax.f32 %v555, 0.0
        %v650 = vmax.f32 %v560, 0.0
        %v651 = vmax.f32 %v563, 0.0
        %v652 = vmax.f32 %v568, 0.0
        %v653 = vmax.f32 %v571, 0.0
        %v654 = vmax.f32 %v576, 0.0
        %v655 = vmax.f32 %v579, 0.0
        %v656 = vmax.f32 %v584, 0.0
        %v657 = vmax.f32 %v587, 0.0
        %v658 = vmax.f32 %v592, 0.0
        %v659 = vmax.f32 %v595, 0.0
        %v660 = vmax.f32 %v600, 0.0
        %v661 = vmax.f32 %v603, 0.0
        %v662 = vmax.f32 %v608, 0.0
        %v663 = vmax.f32 %v611, 0.0
        %v664 = vmax.f32 %v616, 0.0
        %v665 = vmax.f32 %v619, 0.0
        %v666 = vmax.f32 %v624, 0.0
        %v667 = vmax.f32 %v627, 0.0
        %v668 = vmax.f32 %v632, 0.0
        %v669 = vmax.f32 %v635, 0.0
        %vm670 = vcmask 261120
        %671 = vst.msk [vmem:[#allocation2] sm:$0xff] %vm670, 0.0
        %672 = vst.msk [vmem:[#allocation2 + $0x8] sm:$0xff] %vm670, 0.0
        %673 = vst.msk [vmem:[#allocation2 + $0x110] sm:$0xff] %vm670, 0.0
        %674 = vst.msk [vmem:[#allocation2 + $0x118] sm:$0xff] %vm670, 0.0
        %675 = vst.msk [vmem:[#allocation2 + $0x10] sm:$0xff] %vm670, %v638
        %676 = vst.msk [vmem:[#allocation2 + $0x18] sm:$0xff] %vm670, %v639
        %677 = vst.msk [vmem:[#allocation2 + $0x20] sm:$0xff] %vm670, %v640
        %678 = vst.msk [vmem:[#allocation2 + $0x28] sm:$0xff] %vm670, %v641
        %679 = vst.msk [vmem:[#allocation2 + $0x30] sm:$0xff] %vm670, %v642
        %680 = vst.msk [vmem:[#allocation2 + $0x38] sm:$0xff] %vm670, %v643
        %681 = vst.msk [vmem:[#allocation2 + $0x40] sm:$0xff] %vm670, %v644
        %682 = vst.msk [vmem:[#allocation2 + $0x48] sm:$0xff] %vm670, %v645
        %683 = vst.msk [vmem:[#allocation2 + $0x50] sm:$0xff] %vm670, %v646
        %684 = vst.msk [vmem:[#allocation2 + $0x58] sm:$0xff] %vm670, %v647
        %685 = vst.msk [vmem:[#allocation2 + $0x60] sm:$0xff] %vm670, %v648
        %686 = vst.msk [vmem:[#allocation2 + $0x68] sm:$0xff] %vm670, %v649
        %687 = vst.msk [vmem:[#allocation2 + $0x70] sm:$0xff] %vm670, %v650
        %688 = vst.msk [vmem:[#allocation2 + $0x78] sm:$0xff] %vm670, %v651
        %689 = vst.msk [vmem:[#allocation2 + $0x80] sm:$0xff] %vm670, %v652
        %690 = vst.msk [vmem:[#allocation2 + $0x88] sm:$0xff] %vm670, %v653
        %691 = vst.msk [vmem:[#allocation2 + $0x90] sm:$0xff] %vm670, %v654
        %692 = vst.msk [vmem:[#allocation2 + $0x98] sm:$0xff] %vm670, %v655
        %693 = vst.msk [vmem:[#allocation2 + $0xa0] sm:$0xff] %vm670, %v656
        %694 = vst.msk [vmem:[#allocation2 + $0xa8] sm:$0xff] %vm670, %v657
        %695 = vst.msk [vmem:[#allocation2 + $0xb0] sm:$0xff] %vm670, %v658
        %696 = vst.msk [vmem:[#allocation2 + $0xb8] sm:$0xff] %vm670, %v659
        %697 = vst.msk [vmem:[#allocation2 + $0xc0] sm:$0xff] %vm670, %v660
        %698 = vst.msk [vmem:[#allocation2 + $0xc8] sm:$0xff] %vm670, %v661
        %699 = vst.msk [vmem:[#allocation2 + $0xd0] sm:$0xff] %vm670, %v662
        %700 = vst.msk [vmem:[#allocation2 + $0xd8] sm:$0xff] %vm670, %v663
        %701 = vst.msk [vmem:[#allocation2 + $0xe0] sm:$0xff] %vm670, %v664
        %702 = vst.msk [vmem:[#allocation2 + $0xe8] sm:$0xff] %vm670, %v665
        %703 = vst.msk [vmem:[#allocation2 + $0xf0] sm:$0xff] %vm670, %v666
        %704 = vst.msk [vmem:[#allocation2 + $0xf8] sm:$0xff] %vm670, %v667
        %705 = vst.msk [vmem:[#allocation2 + $0x100] sm:$0xff] %vm670, %v668
        %706 = vst.msk [vmem:[#allocation2 + $0x108] sm:$0xff] %vm670, %v669
        %v707 = vlaneseq
        %v708 = vshrl.u32 %v707, 7
        %v709 = vadd.s32 %v708, 8
        %vm710 = vcmp.ge.s32.totalorder %v708, 1
        %vm711 = vcmp.ge.s32.totalorder %v709, 1
        %vm712 = vcmp.lt.s32.totalorder %v708, 15
        %vm713 = vcmp.lt.s32.totalorder %v709, 15
        %v714 = vld [vmem:[#allocation2] sm:$0xff]
        %v715 = vld [vmem:[#allocation2 + $0x8] sm:$0xff]
        %v716 = vld [vmem:[#allocation2 + $0x10] sm:$0xff]
        %v717 = vld [vmem:[#allocation2 + $0x18] sm:$0xff]
        %v718 = vld [vmem:[#allocation2 + $0x20] sm:$0xff]
        %v719 = vld [vmem:[#allocation2 + $0x28] sm:$0xff]
        %v720 = vld [vmem:[#allocation2 + $0x30] sm:$0xff]
        %v721 = vld [vmem:[#allocation2 + $0x38] sm:$0xff]
        %v722 = vld [vmem:[#allocation2 + $0x40] sm:$0xff]
        %v723 = vld [vmem:[#allocation2 + $0x48] sm:$0xff]
        %v724 = vld [vmem:[#allocation2 + $0x50] sm:$0xff]
        %v725 = vld [vmem:[#allocation2 + $0x58] sm:$0xff]
        %v726 = vld [vmem:[#allocation2 + $0x60] sm:$0xff]
        %v727 = vld [vmem:[#allocation2 + $0x68] sm:$0xff]
        %v728 = vld [vmem:[#allocation2 + $0x70] sm:$0xff]
        %v729 = vld [vmem:[#allocation2 + $0x78] sm:$0xff]
        %v730 = vld [vmem:[#allocation2 + $0x80] sm:$0xff]
        %v731 = vld [vmem:[#allocation2 + $0x88] sm:$0xff]
        %v732 = vld [vmem:[#allocation2 + $0x90] sm:$0xff]
        %v733 = vld [vmem:[#allocation2 + $0x98] sm:$0xff]
        %v734 = vld [vmem:[#allocation2 + $0xa0] sm:$0xff]
        %v735 = vld [vmem:[#allocation2 + $0xa8] sm:$0xff]
        %v736 = vld [vmem:[#allocation2 + $0xb0] sm:$0xff]
        %v737 = vld [vmem:[#allocation2 + $0xb8] sm:$0xff]
        %v738 = vld [vmem:[#allocation2 + $0xc0] sm:$0xff]
        %v739 = vld [vmem:[#allocation2 + $0xc8] sm:$0xff]
        %v740 = vld [vmem:[#allocation2 + $0xd0] sm:$0xff]
        %v741 = vld [vmem:[#allocation2 + $0xd8] sm:$0xff]
        %v742 = vld [vmem:[#allocation2 + $0xe0] sm:$0xff]
        %v743 = vld [vmem:[#allocation2 + $0xe8] sm:$0xff]
        %v744 = vld [vmem:[#allocation2 + $0xf0] sm:$0xff]
        %v745 = vld [vmem:[#allocation2 + $0xf8] sm:$0xff]
        %v746 = vrot.slane %v714, 7
        %v747 = vrot.slane %v715, 7
        %v748 = vrot.slane %v716, 7
        %v749 = vrot.slane %v717, 7
        %v750 = vrot.slane %v718, 7
        %v751 = vrot.slane %v719, 7
        %v752 = vrot.slane %v720, 7
        %v753 = vrot.slane %v721, 7
        %v754 = vrot.slane %v722, 7
        %v755 = vrot.slane %v723, 7
        %v756 = vrot.slane %v724, 7
        %v757 = vrot.slane %v725, 7
        %v758 = vrot.slane %v726, 7
        %v759 = vrot.slane %v727, 7
        %v760 = vrot.slane %v728, 7
        %v761 = vrot.slane %v729, 7
        %v762 = vrot.slane %v730, 7
        %v763 = vrot.slane %v731, 7
        %v764 = vrot.slane %v732, 7
        %v765 = vrot.slane %v733, 7
        %v766 = vrot.slane %v734, 7
        %v767 = vrot.slane %v735, 7
        %v768 = vrot.slane %v736, 7
        %v769 = vrot.slane %v737, 7
        %v770 = vrot.slane %v738, 7
        %v771 = vrot.slane %v739, 7
        %v772 = vrot.slane %v740, 7
        %v773 = vrot.slane %v741, 7
        %v774 = vrot.slane %v742, 7
        %v775 = vrot.slane %v743, 7
        %v776 = vrot.slane %v744, 7
        %v777 = vrot.slane %v745, 7
        %vm778 = vcmp.lt.s32.totalorder %v708, 1
        %v779 = vsel %vm778, %v776, %v777
        %v780 = vsel %vm778, %v775, %v776
        %v781 = vsel %vm778, %v774, %v775
        %v782 = vsel %vm778, %v773, %v774
        %v783 = vsel %vm778, %v772, %v773
        %v784 = vsel %vm778, %v771, %v772
        %v785 = vsel %vm778, %v770, %v771
        %v786 = vsel %vm778, %v769, %v770
        %v787 = vsel %vm778, %v768, %v769
        %v788 = vsel %vm778, %v767, %v768
        %v789 = vsel %vm778, %v766, %v767
        %v790 = vsel %vm778, %v765, %v766
        %v791 = vsel %vm778, %v764, %v765
        %v792 = vsel %vm778, %v763, %v764
        %v793 = vsel %vm778, %v762, %v763
        %v794 = vsel %vm778, %v761, %v762
        %v795 = vsel %vm778, %v760, %v761
        %v796 = vsel %vm778, %v759, %v760
        %v797 = vsel %vm778, %v758, %v759
        %v798 = vsel %vm778, %v757, %v758
        %v799 = vsel %vm778, %v756, %v757
        %v800 = vsel %vm778, %v755, %v756
        %v801 = vsel %vm778, %v754, %v755
        %v802 = vsel %vm778, %v753, %v754
        %v803 = vsel %vm778, %v752, %v753
        %v804 = vsel %vm778, %v751, %v752
        %v805 = vsel %vm778, %v750, %v751
        %v806 = vsel %vm778, %v749, %v750
        %v807 = vsel %vm778, %v748, %v749
        %v808 = vsel %vm778, %v747, %v748
        %v809 = vsel %vm778, %v746, %v747
        %v810 = vsel %vm778, %v777, %v746
        %v811 = vsel %vm710, %v810, 0.0
        %v812 = vsel %vm711, %v809, 0.0
        %v813 = vsel %vm710, %v808, 0.0
        %v814 = vsel %vm711, %v807, 0.0
        %v815 = vsel %vm710, %v806, 0.0
        %v816 = vsel %vm711, %v805, 0.0
        %v817 = vsel %vm710, %v804, 0.0
        %v818 = vsel %vm711, %v803, 0.0
        %v819 = vsel %vm710, %v802, 0.0
        %v820 = vsel %vm711, %v801, 0.0
        %v821 = vsel %vm710, %v800, 0.0
        %v822 = vsel %vm711, %v799, 0.0
        %v823 = vsel %vm710, %v798, 0.0
        %v824 = vsel %vm711, %v797, 0.0
        %v825 = vsel %vm710, %v796, 0.0
        %v826 = vsel %vm711, %v795, 0.0
        %v827 = vsel %vm710, %v794, 0.0
        %v828 = vsel %vm711, %v793, 0.0
        %v829 = vsel %vm710, %v792, 0.0
        %v830 = vsel %vm711, %v791, 0.0
        %v831 = vsel %vm710, %v790, 0.0
        %v832 = vsel %vm711, %v789, 0.0
        %v833 = vsel %vm710, %v788, 0.0
        %v834 = vsel %vm711, %v787, 0.0
        %v835 = vsel %vm710, %v786, 0.0
        %v836 = vsel %vm711, %v785, 0.0
        %v837 = vsel %vm710, %v784, 0.0
        %v838 = vsel %vm711, %v783, 0.0
        %v839 = vsel %vm710, %v782, 0.0
        %v840 = vsel %vm711, %v781, 0.0
        %v841 = vsel %vm710, %v780, 0.0
        %v842 = vsel %vm711, %v779, 0.0
        %v843 = vrot.slane %v714, 1
        %v844 = vrot.slane %v715, 1
        %v845 = vrot.slane %v716, 1
        %v846 = vrot.slane %v717, 1
        %v847 = vrot.slane %v718, 1
        %v848 = vrot.slane %v719, 1
        %v849 = vrot.slane %v720, 1
        %v850 = vrot.slane %v721, 1
        %v851 = vrot.slane %v722, 1
        %v852 = vrot.slane %v723, 1
        %v853 = vrot.slane %v724, 1
        %v854 = vrot.slane %v725, 1
        %v855 = vrot.slane %v726, 1
        %v856 = vrot.slane %v727, 1
        %v857 = vrot.slane %v728, 1
        %v858 = vrot.slane %v729, 1
        %v859 = vrot.slane %v730, 1
        %v860 = vrot.slane %v731, 1
        %v861 = vrot.slane %v732, 1
        %v862 = vrot.slane %v733, 1
        %v863 = vrot.slane %v734, 1
        %v864 = vrot.slane %v735, 1
        %v865 = vrot.slane %v736, 1
        %v866 = vrot.slane %v737, 1
        %v867 = vrot.slane %v738, 1
        %v868 = vrot.slane %v739, 1
        %v869 = vrot.slane %v740, 1
        %v870 = vrot.slane %v741, 1
        %v871 = vrot.slane %v742, 1
        %v872 = vrot.slane %v743, 1
        %v873 = vrot.slane %v744, 1
        %v874 = vrot.slane %v745, 1
        %vm875 = vcmp.lt.s32.totalorder %v708, 7
        %v876 = vsel %vm875, %v873, %v874
        %v877 = vsel %vm875, %v872, %v873
        %v878 = vsel %vm875, %v871, %v872
        %v879 = vsel %vm875, %v870, %v871
        %v880 = vsel %vm875, %v869, %v870
        %v881 = vsel %vm875, %v868, %v869
        %v882 = vsel %vm875, %v867, %v868
        %v883 = vsel %vm875, %v866, %v867
        %v884 = vsel %vm875, %v865, %v866
        %v885 = vsel %vm875, %v864, %v865
        %v886 = vsel %vm875, %v863, %v864
        %v887 = vsel %vm875, %v862, %v863
        %v888 = vsel %vm875, %v861, %v862
        %v889 = vsel %vm875, %v860, %v861
        %v890 = vsel %vm875, %v859, %v860
        %v891 = vsel %vm875, %v858, %v859
        %v892 = vsel %vm875, %v857, %v858
        %v893 = vsel %vm875, %v856, %v857
        %v894 = vsel %vm875, %v855, %v856
        %v895 = vsel %vm875, %v854, %v855
        %v896 = vsel %vm875, %v853, %v854
        %v897 = vsel %vm875, %v852, %v853
        %v898 = vsel %vm875, %v851, %v852
        %v899 = vsel %vm875, %v850, %v851
        %v900 = vsel %vm875, %v849, %v850
        %v901 = vsel %vm875, %v848, %v849
        %v902 = vsel %vm875, %v847, %v848
        %v903 = vsel %vm875, %v846, %v847
        %v904 = vsel %vm875, %v845, %v846
        %v905 = vsel %vm875, %v844, %v845
        %v906 = vsel %vm875, %v843, %v844
        %v907 = vsel %vm875, %v874, %v843
        %v908 = vsel %vm712, %v906, 0.0
        %v909 = vsel %vm713, %v905, 0.0
        %v910 = vsel %vm712, %v904, 0.0
        %v911 = vsel %vm713, %v903, 0.0
        %v912 = vsel %vm712, %v902, 0.0
        %v913 = vsel %vm713, %v901, 0.0
        %v914 = vsel %vm712, %v900, 0.0
        %v915 = vsel %vm713, %v899, 0.0
        %v916 = vsel %vm712, %v898, 0.0
        %v917 = vsel %vm713, %v897, 0.0
        %v918 = vsel %vm712, %v896, 0.0
        %v919 = vsel %vm713, %v895, 0.0
        %v920 = vsel %vm712, %v894, 0.0
        %v921 = vsel %vm713, %v893, 0.0
        %v922 = vsel %vm712, %v892, 0.0
        %v923 = vsel %vm713, %v891, 0.0
        %v924 = vsel %vm712, %v890, 0.0
        %v925 = vsel %vm713, %v889, 0.0
        %v926 = vsel %vm712, %v888, 0.0
        %v927 = vsel %vm713, %v887, 0.0
        %v928 = vsel %vm712, %v886, 0.0
        %v929 = vsel %vm713, %v885, 0.0
        %v930 = vsel %vm712, %v884, 0.0
        %v931 = vsel %vm713, %v883, 0.0
        %v932 = vsel %vm712, %v882, 0.0
        %v933 = vsel %vm713, %v881, 0.0
        %v934 = vsel %vm712, %v880, 0.0
        %v935 = vsel %vm713, %v879, 0.0
        %v936 = vsel %vm712, %v878, 0.0
        %v937 = vsel %vm713, %v877, 0.0
        %v938 = vsel %vm712, %v876, 0.0
        %v939 = vsel %vm713, %v907, 0.0
        %v940 = vld [vmem:[#allocation2 + $0x100] sm:$0xff]
        %v941 = vld [vmem:[#allocation2 + $0x108] sm:$0xff]
        %v942 = vrot.slane %v940, 7
        %v943 = vrot.slane %v941, 7
        %v944 = vsel %vm778, %v942, %v943
        %v945 = vsel %vm778, %v777, %v942
        %v946 = vsel %vm778, %v943, %v748
        %v947 = vsel %vm710, %v946, 0.0
        %v948 = vsel %vm710, %v945, 0.0
        %v949 = vsel %vm711, %v944, 0.0
        %v950 = vrot.slane %v940, 1
        %v951 = vrot.slane %v941, 1
        %v952 = vsel %vm875, %v950, %v951
        %v953 = vsel %vm875, %v874, %v950
        %v954 = vsel %vm875, %v951, %v845
        %v955 = vsel %vm713, %v953, 0.0
        %v956 = vsel %vm712, %v952, 0.0
        %v957 = vsel %vm713, %v954, 0.0
        %v958 = vld [vmem:[#allocation2 + $0x110] sm:$0xff]
        %v959 = vld [vmem:[#allocation2 + $0x118] sm:$0xff]
        %v960 = vrot.slane %v958, 7
        %v961 = vrot.slane %v959, 7
        %v962 = vsel %vm778, %v960, %v961
        %v963 = vsel %vm778, %v943, %v960
        %v964 = vsel %vm778, %v961, %v750
        %v965 = vsel %vm710, %v964, 0.0
        %v966 = vsel %vm710, %v963, 0.0
        %v967 = vsel %vm711, %v962, 0.0
        %v968 = vrot.slane %v958, 1
        %v969 = vrot.slane %v959, 1
        %v970 = vsel %vm875, %v968, %v969
        %v971 = vsel %vm875, %v951, %v968
        %v972 = vsel %vm875, %v969, %v847
        %v973 = vsel %vm713, %v971, 0.0
        %v974 = vsel %vm712, %v970, 0.0
        %v975 = vsel %vm713, %v972, 0.0
        %1008 = vrot.lane.b32.xlu0 %v714, 32
        %v1009 = vpop.permute.xlu0 %1008
        %1010 = vrot.lane.b32.xlu0 %v715, 32
        %v1011 = vpop.permute.xlu0 %1010
        %1012 = vrot.lane.b32.xlu0 %v716, 32
        %v1013 = vpop.permute.xlu0 %1012
        %1014 = vrot.lane.b32.xlu0 %v717, 32
        %v1015 = vpop.permute.xlu0 %1014
        %1016 = vrot.lane.b32.xlu0 %v718, 32
        %v1017 = vpop.permute.xlu0 %1016
        %1018 = vrot.lane.b32.xlu0 %v719, 32
        %v1019 = vpop.permute.xlu0 %1018
        %1020 = vrot.lane.b32.xlu0 %v720, 32
        %v1021 = vpop.permute.xlu0 %1020
        %1022 = vrot.lane.b32.xlu0 %v721, 32
        %v1023 = vpop.permute.xlu0 %1022
        %1024 = vrot.lane.b32.xlu0 %v722, 32
        %v1025 = vpop.permute.xlu0 %1024
        %1026 = vrot.lane.b32.xlu0 %v723, 32
        %v1027 = vpop.permute.xlu0 %1026
        %1028 = vrot.lane.b32.xlu0 %v724, 32
        %v1029 = vpop.permute.xlu0 %1028
        %1030 = vrot.lane.b32.xlu0 %v725, 32
        %v1031 = vpop.permute.xlu0 %1030
        %1032 = vrot.lane.b32.xlu0 %v726, 32
        %v1033 = vpop.permute.xlu0 %1032
        %1034 = vrot.lane.b32.xlu0 %v727, 32
        %v1035 = vpop.permute.xlu0 %1034
        %1036 = vrot.lane.b32.xlu0 %v728, 32
        %v1037 = vpop.permute.xlu0 %1036
        %1038 = vrot.lane.b32.xlu0 %v729, 32
        %v1039 = vpop.permute.xlu0 %1038
        %1040 = vrot.lane.b32.xlu0 %v730, 32
        %v1041 = vpop.permute.xlu0 %1040
        %1042 = vrot.lane.b32.xlu0 %v731, 32
        %v1043 = vpop.permute.xlu0 %1042
        %1044 = vrot.lane.b32.xlu0 %v732, 32
        %v1045 = vpop.permute.xlu0 %1044
        %1046 = vrot.lane.b32.xlu0 %v733, 32
        %v1047 = vpop.permute.xlu0 %1046
        %1048 = vrot.lane.b32.xlu0 %v734, 32
        %v1049 = vpop.permute.xlu0 %1048
        %1050 = vrot.lane.b32.xlu0 %v735, 32
        %v1051 = vpop.permute.xlu0 %1050
        %1052 = vrot.lane.b32.xlu0 %v736, 32
        %v1053 = vpop.permute.xlu0 %1052
        %1054 = vrot.lane.b32.xlu0 %v737, 32
        %v1055 = vpop.permute.xlu0 %1054
        %1056 = vrot.lane.b32.xlu0 %v738, 32
        %v1057 = vpop.permute.xlu0 %1056
        %1058 = vrot.lane.b32.xlu0 %v739, 32
        %v1059 = vpop.permute.xlu0 %1058
        %1060 = vrot.lane.b32.xlu0 %v740, 32
        %v1061 = vpop.permute.xlu0 %1060
        %1062 = vrot.lane.b32.xlu0 %v741, 32
        %v1063 = vpop.permute.xlu0 %1062
        %1064 = vrot.lane.b32.xlu0 %v742, 32
        %v1065 = vpop.permute.xlu0 %1064
        %1066 = vrot.lane.b32.xlu0 %v743, 32
        %v1067 = vpop.permute.xlu0 %1066
        %1068 = vrot.lane.b32.xlu0 %v744, 32
        %v1069 = vpop.permute.xlu0 %1068
        %1070 = vrot.lane.b32.xlu0 %v745, 32
        %v1071 = vpop.permute.xlu0 %1070
        %1136 = vrot.lane.b32.xlu0 %v908, 64
        %v1137 = vpop.permute.xlu0 %1136
        %1138 = vrot.lane.b32.xlu0 %v909, 64
        %v1139 = vpop.permute.xlu0 %1138
        %1140 = vrot.lane.b32.xlu0 %v910, 64
        %v1141 = vpop.permute.xlu0 %1140
        %1142 = vrot.lane.b32.xlu0 %v911, 64
        %v1143 = vpop.permute.xlu0 %1142
        %1144 = vrot.lane.b32.xlu0 %v912, 64
        %v1145 = vpop.permute.xlu0 %1144
        %1146 = vrot.lane.b32.xlu0 %v913, 64
        %v1147 = vpop.permute.xlu0 %1146
        %1148 = vrot.lane.b32.xlu0 %v914, 64
        %v1149 = vpop.permute.xlu0 %1148
        %1150 = vrot.lane.b32.xlu0 %v915, 64
        %v1151 = vpop.permute.xlu0 %1150
        %1152 = vrot.lane.b32.xlu0 %v916, 64
        %v1153 = vpop.permute.xlu0 %1152
        %1154 = vrot.lane.b32.xlu0 %v917, 64
        %v1155 = vpop.permute.xlu0 %1154
        %1156 = vrot.lane.b32.xlu0 %v918, 64
        %v1157 = vpop.permute.xlu0 %1156
        %1158 = vrot.lane.b32.xlu0 %v919, 64
        %v1159 = vpop.permute.xlu0 %1158
        %1160 = vrot.lane.b32.xlu0 %v920, 64
        %v1161 = vpop.permute.xlu0 %1160
        %1162 = vrot.lane.b32.xlu0 %v921, 64
        %v1163 = vpop.permute.xlu0 %1162
        %1164 = vrot.lane.b32.xlu0 %v922, 64
        %v1165 = vpop.permute.xlu0 %1164
        %1166 = vrot.lane.b32.xlu0 %v923, 64
        %v1167 = vpop.permute.xlu0 %1166
        %1168 = vrot.lane.b32.xlu0 %v924, 64
        %v1169 = vpop.permute.xlu0 %1168
        %1170 = vrot.lane.b32.xlu0 %v925, 64
        %v1171 = vpop.permute.xlu0 %1170
        %1172 = vrot.lane.b32.xlu0 %v926, 64
        %v1173 = vpop.permute.xlu0 %1172
        %1174 = vrot.lane.b32.xlu0 %v927, 64
        %v1175 = vpop.permute.xlu0 %1174
        %1176 = vrot.lane.b32.xlu0 %v928, 64
        %v1177 = vpop.permute.xlu0 %1176
        %1178 = vrot.lane.b32.xlu0 %v929, 64
        %v1179 = vpop.permute.xlu0 %1178
        %1180 = vrot.lane.b32.xlu0 %v930, 64
        %v1181 = vpop.permute.xlu0 %1180
        %1182 = vrot.lane.b32.xlu0 %v931, 64
        %v1183 = vpop.permute.xlu0 %1182
        %1184 = vrot.lane.b32.xlu0 %v932, 64
        %v1185 = vpop.permute.xlu0 %1184
        %1186 = vrot.lane.b32.xlu0 %v933, 64
        %v1187 = vpop.permute.xlu0 %1186
        %1188 = vrot.lane.b32.xlu0 %v934, 64
        %v1189 = vpop.permute.xlu0 %1188
        %1190 = vrot.lane.b32.xlu0 %v935, 64
        %v1191 = vpop.permute.xlu0 %1190
        %1192 = vrot.lane.b32.xlu0 %v936, 64
        %v1193 = vpop.permute.xlu0 %1192
        %1194 = vrot.lane.b32.xlu0 %v937, 64
        %v1195 = vpop.permute.xlu0 %1194
        %1196 = vrot.lane.b32.xlu0 %v938, 64
        %v1197 = vpop.permute.xlu0 %1196
        %1198 = vrot.lane.b32.xlu0 %v939, 64
        %v1199 = vpop.permute.xlu0 %1198
        %1264 = vrot.lane.b32.xlu0 %v947, 96
        %v1265 = vpop.permute.xlu0 %1264
        %1266 = vrot.lane.b32.xlu0 %v814, 96
        %v1267 = vpop.permute.xlu0 %1266
        %1268 = vrot.lane.b32.xlu0 %v815, 96
        %v1269 = vpop.permute.xlu0 %1268
        %1270 = vrot.lane.b32.xlu0 %v816, 96
        %v1271 = vpop.permute.xlu0 %1270
        %1272 = vrot.lane.b32.xlu0 %v817, 96
        %v1273 = vpop.permute.xlu0 %1272
        %1274 = vrot.lane.b32.xlu0 %v818, 96
        %v1275 = vpop.permute.xlu0 %1274
        %1276 = vrot.lane.b32.xlu0 %v819, 96
        %v1277 = vpop.permute.xlu0 %1276
        %1278 = vrot.lane.b32.xlu0 %v820, 96
        %v1279 = vpop.permute.xlu0 %1278
        %1280 = vrot.lane.b32.xlu0 %v821, 96
        %v1281 = vpop.permute.xlu0 %1280
        %1282 = vrot.lane.b32.xlu0 %v822, 96
        %v1283 = vpop.permute.xlu0 %1282
        %1284 = vrot.lane.b32.xlu0 %v823, 96
        %v1285 = vpop.permute.xlu0 %1284
        %1286 = vrot.lane.b32.xlu0 %v824, 96
        %v1287 = vpop.permute.xlu0 %1286
        %1288 = vrot.lane.b32.xlu0 %v825, 96
        %v1289 = vpop.permute.xlu0 %1288
        %1290 = vrot.lane.b32.xlu0 %v826, 96
        %v1291 = vpop.permute.xlu0 %1290
        %1292 = vrot.lane.b32.xlu0 %v827, 96
        %v1293 = vpop.permute.xlu0 %1292
        %1294 = vrot.lane.b32.xlu0 %v828, 96
        %v1295 = vpop.permute.xlu0 %1294
        %1296 = vrot.lane.b32.xlu0 %v829, 96
        %v1297 = vpop.permute.xlu0 %1296
        %1298 = vrot.lane.b32.xlu0 %v830, 96
        %v1299 = vpop.permute.xlu0 %1298
        %1300 = vrot.lane.b32.xlu0 %v831, 96
        %v1301 = vpop.permute.xlu0 %1300
        %1302 = vrot.lane.b32.xlu0 %v832, 96
        %v1303 = vpop.permute.xlu0 %1302
        %1304 = vrot.lane.b32.xlu0 %v833, 96
        %v1305 = vpop.permute.xlu0 %1304
        %1306 = vrot.lane.b32.xlu0 %v834, 96
        %v1307 = vpop.permute.xlu0 %1306
        %1308 = vrot.lane.b32.xlu0 %v835, 96
        %v1309 = vpop.permute.xlu0 %1308
        %1310 = vrot.lane.b32.xlu0 %v836, 96
        %v1311 = vpop.permute.xlu0 %1310
        %1312 = vrot.lane.b32.xlu0 %v837, 96
        %v1313 = vpop.permute.xlu0 %1312
        %1314 = vrot.lane.b32.xlu0 %v838, 96
        %v1315 = vpop.permute.xlu0 %1314
        %1316 = vrot.lane.b32.xlu0 %v839, 96
        %v1317 = vpop.permute.xlu0 %1316
        %1318 = vrot.lane.b32.xlu0 %v840, 96
        %v1319 = vpop.permute.xlu0 %1318
        %1320 = vrot.lane.b32.xlu0 %v841, 96
        %v1321 = vpop.permute.xlu0 %1320
        %1322 = vrot.lane.b32.xlu0 %v842, 96
        %v1323 = vpop.permute.xlu0 %1322
        %1324 = vrot.lane.b32.xlu0 %v948, 96
        %v1325 = vpop.permute.xlu0 %1324
        %1326 = vrot.lane.b32.xlu0 %v949, 96
        %v1327 = vpop.permute.xlu0 %1326
        %1363 = vrot.lane.b32.xlu0 %v910, 32
        %v1364 = vpop.permute.xlu0 %1363
        %1365 = vrot.lane.b32.xlu0 %v911, 32
        %v1366 = vpop.permute.xlu0 %1365
        %1367 = vrot.lane.b32.xlu0 %v912, 32
        %v1368 = vpop.permute.xlu0 %1367
        %1369 = vrot.lane.b32.xlu0 %v913, 32
        %v1370 = vpop.permute.xlu0 %1369
        %1371 = vrot.lane.b32.xlu0 %v914, 32
        %v1372 = vpop.permute.xlu0 %1371
        %1373 = vrot.lane.b32.xlu0 %v915, 32
        %v1374 = vpop.permute.xlu0 %1373
        %1375 = vrot.lane.b32.xlu0 %v916, 32
        %v1376 = vpop.permute.xlu0 %1375
        %1377 = vrot.lane.b32.xlu0 %v917, 32
        %v1378 = vpop.permute.xlu0 %1377
        %1379 = vrot.lane.b32.xlu0 %v918, 32
        %v1380 = vpop.permute.xlu0 %1379
        %1381 = vrot.lane.b32.xlu0 %v919, 32
        %v1382 = vpop.permute.xlu0 %1381
        %1383 = vrot.lane.b32.xlu0 %v920, 32
        %v1384 = vpop.permute.xlu0 %1383
        %1385 = vrot.lane.b32.xlu0 %v921, 32
        %v1386 = vpop.permute.xlu0 %1385
        %1387 = vrot.lane.b32.xlu0 %v922, 32
        %v1388 = vpop.permute.xlu0 %1387
        %1389 = vrot.lane.b32.xlu0 %v923, 32
        %v1390 = vpop.permute.xlu0 %1389
        %1391 = vrot.lane.b32.xlu0 %v924, 32
        %v1392 = vpop.permute.xlu0 %1391
        %1393 = vrot.lane.b32.xlu0 %v925, 32
        %v1394 = vpop.permute.xlu0 %1393
        %1395 = vrot.lane.b32.xlu0 %v926, 32
        %v1396 = vpop.permute.xlu0 %1395
        %1397 = vrot.lane.b32.xlu0 %v927, 32
        %v1398 = vpop.permute.xlu0 %1397
        %1399 = vrot.lane.b32.xlu0 %v928, 32
        %v1400 = vpop.permute.xlu0 %1399
        %1401 = vrot.lane.b32.xlu0 %v929, 32
        %v1402 = vpop.permute.xlu0 %1401
        %1403 = vrot.lane.b32.xlu0 %v930, 32
        %v1404 = vpop.permute.xlu0 %1403
        %1405 = vrot.lane.b32.xlu0 %v931, 32
        %v1406 = vpop.permute.xlu0 %1405
        %1407 = vrot.lane.b32.xlu0 %v932, 32
        %v1408 = vpop.permute.xlu0 %1407
        %1409 = vrot.lane.b32.xlu0 %v933, 32
        %v1410 = vpop.permute.xlu0 %1409
        %1411 = vrot.lane.b32.xlu0 %v934, 32
        %v1412 = vpop.permute.xlu0 %1411
        %1413 = vrot.lane.b32.xlu0 %v935, 32
        %v1414 = vpop.permute.xlu0 %1413
        %1415 = vrot.lane.b32.xlu0 %v936, 32
        %v1416 = vpop.permute.xlu0 %1415
        %1417 = vrot.lane.b32.xlu0 %v937, 32
        %v1418 = vpop.permute.xlu0 %1417
        %1419 = vrot.lane.b32.xlu0 %v938, 32
        %v1420 = vpop.permute.xlu0 %1419
        %1421 = vrot.lane.b32.xlu0 %v955, 32
        %v1422 = vpop.permute.xlu0 %1421
        %1423 = vrot.lane.b32.xlu0 %v956, 32
        %v1424 = vpop.permute.xlu0 %1423
        %1425 = vrot.lane.b32.xlu0 %v957, 32
        %v1426 = vpop.permute.xlu0 %1425
        %1462 = vrot.lane.b32.xlu0 %v965, 64
        %v1463 = vpop.permute.xlu0 %1462
        %1464 = vrot.lane.b32.xlu0 %v816, 64
        %v1465 = vpop.permute.xlu0 %1464
        %1466 = vrot.lane.b32.xlu0 %v817, 64
        %v1467 = vpop.permute.xlu0 %1466
        %1468 = vrot.lane.b32.xlu0 %v818, 64
        %v1469 = vpop.permute.xlu0 %1468
        %1470 = vrot.lane.b32.xlu0 %v819, 64
        %v1471 = vpop.permute.xlu0 %1470
        %1472 = vrot.lane.b32.xlu0 %v820, 64
        %v1473 = vpop.permute.xlu0 %1472
        %1474 = vrot.lane.b32.xlu0 %v821, 64
        %v1475 = vpop.permute.xlu0 %1474
        %1476 = vrot.lane.b32.xlu0 %v822, 64
        %v1477 = vpop.permute.xlu0 %1476
        %1478 = vrot.lane.b32.xlu0 %v823, 64
        %v1479 = vpop.permute.xlu0 %1478
        %1480 = vrot.lane.b32.xlu0 %v824, 64
        %v1481 = vpop.permute.xlu0 %1480
        %1482 = vrot.lane.b32.xlu0 %v825, 64
        %v1483 = vpop.permute.xlu0 %1482
        %1484 = vrot.lane.b32.xlu0 %v826, 64
        %v1485 = vpop.permute.xlu0 %1484
        %1486 = vrot.lane.b32.xlu0 %v827, 64
        %v1487 = vpop.permute.xlu0 %1486
        %1488 = vrot.lane.b32.xlu0 %v828, 64
        %v1489 = vpop.permute.xlu0 %1488
        %1490 = vrot.lane.b32.xlu0 %v829, 64
        %v1491 = vpop.permute.xlu0 %1490
        %1492 = vrot.lane.b32.xlu0 %v830, 64
        %v1493 = vpop.permute.xlu0 %1492
        %1494 = vrot.lane.b32.xlu0 %v831, 64
        %v1495 = vpop.permute.xlu0 %1494
        %1496 = vrot.lane.b32.xlu0 %v832, 64
        %v1497 = vpop.permute.xlu0 %1496
        %1498 = vrot.lane.b32.xlu0 %v833, 64
        %v1499 = vpop.permute.xlu0 %1498
        %1500 = vrot.lane.b32.xlu0 %v834, 64
        %v1501 = vpop.permute.xlu0 %1500
        %1502 = vrot.lane.b32.xlu0 %v835, 64
        %v1503 = vpop.permute.xlu0 %1502
        %1504 = vrot.lane.b32.xlu0 %v836, 64
        %v1505 = vpop.permute.xlu0 %1504
        %1506 = vrot.lane.b32.xlu0 %v837, 64
        %v1507 = vpop.permute.xlu0 %1506
        %1508 = vrot.lane.b32.xlu0 %v838, 64
        %v1509 = vpop.permute.xlu0 %1508
        %1510 = vrot.lane.b32.xlu0 %v839, 64
        %v1511 = vpop.permute.xlu0 %1510
        %1512 = vrot.lane.b32.xlu0 %v840, 64
        %v1513 = vpop.permute.xlu0 %1512
        %1514 = vrot.lane.b32.xlu0 %v841, 64
        %v1515 = vpop.permute.xlu0 %1514
        %1516 = vrot.lane.b32.xlu0 %v842, 64
        %v1517 = vpop.permute.xlu0 %1516
        %1518 = vrot.lane.b32.xlu0 %v948, 64
        %v1519 = vpop.permute.xlu0 %1518
        %1520 = vrot.lane.b32.xlu0 %v949, 64
        %v1521 = vpop.permute.xlu0 %1520
        %1522 = vrot.lane.b32.xlu0 %v966, 64
        %v1523 = vpop.permute.xlu0 %1522
        %1524 = vrot.lane.b32.xlu0 %v967, 64
        %v1525 = vpop.permute.xlu0 %1524
        %1562 = vrot.lane.b32.xlu0 %v718, 96
        %v1563 = vpop.permute.xlu0 %1562
        %1564 = vrot.lane.b32.xlu0 %v719, 96
        %v1565 = vpop.permute.xlu0 %1564
        %1566 = vrot.lane.b32.xlu0 %v720, 96
        %v1567 = vpop.permute.xlu0 %1566
        %1568 = vrot.lane.b32.xlu0 %v721, 96
        %v1569 = vpop.permute.xlu0 %1568
        %1570 = vrot.lane.b32.xlu0 %v722, 96
        %v1571 = vpop.permute.xlu0 %1570
        %1572 = vrot.lane.b32.xlu0 %v723, 96
        %v1573 = vpop.permute.xlu0 %1572
        %1574 = vrot.lane.b32.xlu0 %v724, 96
        %v1575 = vpop.permute.xlu0 %1574
        %1576 = vrot.lane.b32.xlu0 %v725, 96
        %v1577 = vpop.permute.xlu0 %1576
        %1578 = vrot.lane.b32.xlu0 %v726, 96
        %v1579 = vpop.permute.xlu0 %1578
        %1580 = vrot.lane.b32.xlu0 %v727, 96
        %v1581 = vpop.permute.xlu0 %1580
        %1582 = vrot.lane.b32.xlu0 %v728, 96
        %v1583 = vpop.permute.xlu0 %1582
        %1584 = vrot.lane.b32.xlu0 %v729, 96
        %v1585 = vpop.permute.xlu0 %1584
        %1586 = vrot.lane.b32.xlu0 %v730, 96
        %v1587 = vpop.permute.xlu0 %1586
        %1588 = vrot.lane.b32.xlu0 %v731, 96
        %v1589 = vpop.permute.xlu0 %1588
        %1590 = vrot.lane.b32.xlu0 %v732, 96
        %v1591 = vpop.permute.xlu0 %1590
        %1592 = vrot.lane.b32.xlu0 %v733, 96
        %v1593 = vpop.permute.xlu0 %1592
        %1594 = vrot.lane.b32.xlu0 %v734, 96
        %v1595 = vpop.permute.xlu0 %1594
        %1596 = vrot.lane.b32.xlu0 %v735, 96
        %v1597 = vpop.permute.xlu0 %1596
        %1598 = vrot.lane.b32.xlu0 %v736, 96
        %v1599 = vpop.permute.xlu0 %1598
        %1600 = vrot.lane.b32.xlu0 %v737, 96
        %v1601 = vpop.permute.xlu0 %1600
        %1602 = vrot.lane.b32.xlu0 %v738, 96
        %v1603 = vpop.permute.xlu0 %1602
        %1604 = vrot.lane.b32.xlu0 %v739, 96
        %v1605 = vpop.permute.xlu0 %1604
        %1606 = vrot.lane.b32.xlu0 %v740, 96
        %v1607 = vpop.permute.xlu0 %1606
        %1608 = vrot.lane.b32.xlu0 %v741, 96
        %v1609 = vpop.permute.xlu0 %1608
        %1610 = vrot.lane.b32.xlu0 %v742, 96
        %v1611 = vpop.permute.xlu0 %1610
        %1612 = vrot.lane.b32.xlu0 %v743, 96
        %v1613 = vpop.permute.xlu0 %1612
        %1614 = vrot.lane.b32.xlu0 %v744, 96
        %v1615 = vpop.permute.xlu0 %1614
        %1616 = vrot.lane.b32.xlu0 %v745, 96
        %v1617 = vpop.permute.xlu0 %1616
        %1618 = vrot.lane.b32.xlu0 %v940, 96
        %v1619 = vpop.permute.xlu0 %1618
        %1620 = vrot.lane.b32.xlu0 %v941, 96
        %v1621 = vpop.permute.xlu0 %1620
        %1622 = vrot.lane.b32.xlu0 %v958, 96
        %v1623 = vpop.permute.xlu0 %1622
        %1624 = vrot.lane.b32.xlu0 %v959, 96
        %v1625 = vpop.permute.xlu0 %1624
        %v1658 = vsel %vm670, %v811, %v1009
        %v1659 = vsel %vm670, %v812, %v1011
        %v1660 = vsel %vm670, %v813, %v1013
        %v1661 = vsel %vm670, %v814, %v1015
        %v1662 = vsel %vm670, %v815, %v1017
        %v1663 = vsel %vm670, %v816, %v1019
        %v1664 = vsel %vm670, %v817, %v1021
        %v1665 = vsel %vm670, %v818, %v1023
        %v1666 = vsel %vm670, %v819, %v1025
        %v1667 = vsel %vm670, %v820, %v1027
        %v1668 = vsel %vm670, %v821, %v1029
        %v1669 = vsel %vm670, %v822, %v1031
        %v1670 = vsel %vm670, %v823, %v1033
        %v1671 = vsel %vm670, %v824, %v1035
        %v1672 = vsel %vm670, %v825, %v1037
        %v1673 = vsel %vm670, %v826, %v1039
        %v1674 = vsel %vm670, %v827, %v1041
        %v1675 = vsel %vm670, %v828, %v1043
        %v1676 = vsel %vm670, %v829, %v1045
        %v1677 = vsel %vm670, %v830, %v1047
        %v1678 = vsel %vm670, %v831, %v1049
        %v1679 = vsel %vm670, %v832, %v1051
        %v1680 = vsel %vm670, %v833, %v1053
        %v1681 = vsel %vm670, %v834, %v1055
        %v1682 = vsel %vm670, %v835, %v1057
        %v1683 = vsel %vm670, %v836, %v1059
        %v1684 = vsel %vm670, %v837, %v1061
        %v1685 = vsel %vm670, %v838, %v1063
        %v1686 = vsel %vm670, %v839, %v1065
        %v1687 = vsel %vm670, %v840, %v1067
        %v1688 = vsel %vm670, %v841, %v1069
        %v1689 = vsel %vm670, %v842, %v1071
        %vm1690 = vcmask 523264
        %v1691 = vsel %vm1690, %v1658, %v1137
        %v1692 = vsel %vm1690, %v1659, %v1139
        %v1693 = vsel %vm1690, %v1660, %v1141
        %v1694 = vsel %vm1690, %v1661, %v1143
        %v1695 = vsel %vm1690, %v1662, %v1145
        %v1696 = vsel %vm1690, %v1663, %v1147
        %v1697 = vsel %vm1690, %v1664, %v1149
        %v1698 = vsel %vm1690, %v1665, %v1151
        %v1699 = vsel %vm1690, %v1666, %v1153
        %v1700 = vsel %vm1690, %v1667, %v1155
        %v1701 = vsel %vm1690, %v1668, %v1157
        %v1702 = vsel %vm1690, %v1669, %v1159
        %v1703 = vsel %vm1690, %v1670, %v1161
        %v1704 = vsel %vm1690, %v1671, %v1163
        %v1705 = vsel %vm1690, %v1672, %v1165
        %v1706 = vsel %vm1690, %v1673, %v1167
        %v1707 = vsel %vm1690, %v1674, %v1169
        %v1708 = vsel %vm1690, %v1675, %v1171
        %v1709 = vsel %vm1690, %v1676, %v1173
        %v1710 = vsel %vm1690, %v1677, %v1175
        %v1711 = vsel %vm1690, %v1678, %v1177
        %v1712 = vsel %vm1690, %v1679, %v1179
        %v1713 = vsel %vm1690, %v1680, %v1181
        %v1714 = vsel %vm1690, %v1681, %v1183
        %v1715 = vsel %vm1690, %v1682, %v1185
        %v1716 = vsel %vm1690, %v1683, %v1187
        %v1717 = vsel %vm1690, %v1684, %v1189
        %v1718 = vsel %vm1690, %v1685, %v1191
        %v1719 = vsel %vm1690, %v1686, %v1193
        %v1720 = vsel %vm1690, %v1687, %v1195
        %v1721 = vsel %vm1690, %v1688, %v1197
        %v1722 = vsel %vm1690, %v1689, %v1199
        %vm1723 = vcmask 785408
        %v1724 = vsel %vm1723, %v1691, %v1265
        %v1725 = vsel %vm1723, %v1692, %v1267
        %v1726 = vsel %vm1723, %v1693, %v1269
        %v1727 = vsel %vm1723, %v1694, %v1271
        %v1728 = vsel %vm1723, %v1695, %v1273
        %v1729 = vsel %vm1723, %v1696, %v1275
        %v1730 = vsel %vm1723, %v1697, %v1277
        %v1731 = vsel %vm1723, %v1698, %v1279
        %v1732 = vsel %vm1723, %v1699, %v1281
        %v1733 = vsel %vm1723, %v1700, %v1283
        %v1734 = vsel %vm1723, %v1701, %v1285
        %v1735 = vsel %vm1723, %v1702, %v1287
        %v1736 = vsel %vm1723, %v1703, %v1289
        %v1737 = vsel %vm1723, %v1704, %v1291
        %v1738 = vsel %vm1723, %v1705, %v1293
        %v1739 = vsel %vm1723, %v1706, %v1295
        %v1740 = vsel %vm1723, %v1707, %v1297
        %v1741 = vsel %vm1723, %v1708, %v1299
        %v1742 = vsel %vm1723, %v1709, %v1301
        %v1743 = vsel %vm1723, %v1710, %v1303
        %v1744 = vsel %vm1723, %v1711, %v1305
        %v1745 = vsel %vm1723, %v1712, %v1307
        %v1746 = vsel %vm1723, %v1713, %v1309
        %v1747 = vsel %vm1723, %v1714, %v1311
        %v1748 = vsel %vm1723, %v1715, %v1313
        %v1749 = vsel %vm1723, %v1716, %v1315
        %v1750 = vsel %vm1723, %v1717, %v1317
        %v1751 = vsel %vm1723, %v1718, %v1319
        %v1752 = vsel %vm1723, %v1719, %v1321
        %v1753 = vsel %vm1723, %v1720, %v1323
        %v1754 = vsel %vm1723, %v1721, %v1325
        %v1755 = vsel %vm1723, %v1722, %v1327
        %v1756 = vsel %vm670, %v716, %v1364
        %v1757 = vsel %vm670, %v717, %v1366
        %v1758 = vsel %vm670, %v718, %v1368
        %v1759 = vsel %vm670, %v719, %v1370
        %v1760 = vsel %vm670, %v720, %v1372
        %v1761 = vsel %vm670, %v721, %v1374
        %v1762 = vsel %vm670, %v722, %v1376
        %v1763 = vsel %vm670, %v723, %v1378
        %v1764 = vsel %vm670, %v724, %v1380
        %v1765 = vsel %vm670, %v725, %v1382
        %v1766 = vsel %vm670, %v726, %v1384
        %v1767 = vsel %vm670, %v727, %v1386
        %v1768 = vsel %vm670, %v728, %v1388
        %v1769 = vsel %vm670, %v729, %v1390
        %v1770 = vsel %vm670, %v730, %v1392
        %v1771 = vsel %vm670, %v731, %v1394
        %v1772 = vsel %vm670, %v732, %v1396
        %v1773 = vsel %vm670, %v733, %v1398
        %v1774 = vsel %vm670, %v734, %v1400
        %v1775 = vsel %vm670, %v735, %v1402
        %v1776 = vsel %vm670, %v736, %v1404
        %v1777 = vsel %vm670, %v737, %v1406
        %v1778 = vsel %vm670, %v738, %v1408
        %v1779 = vsel %vm670, %v739, %v1410
        %v1780 = vsel %vm670, %v740, %v1412
        %v1781 = vsel %vm670, %v741, %v1414
        %v1782 = vsel %vm670, %v742, %v1416
        %v1783 = vsel %vm670, %v743, %v1418
        %v1784 = vsel %vm670, %v744, %v1420
        %v1785 = vsel %vm670, %v745, %v1422
        %v1786 = vsel %vm670, %v940, %v1424
        %v1787 = vsel %vm670, %v941, %v1426
        %v1788 = vsel %vm1690, %v1756, %v1463
        %v1789 = vsel %vm1690, %v1757, %v1465
        %v1790 = vsel %vm1690, %v1758, %v1467
        %v1791 = vsel %vm1690, %v1759, %v1469
        %v1792 = vsel %vm1690, %v1760, %v1471
        %v1793 = vsel %vm1690, %v1761, %v1473
        %v1794 = vsel %vm1690, %v1762, %v1475
        %v1795 = vsel %vm1690, %v1763, %v1477
        %v1796 = vsel %vm1690, %v1764, %v1479
        %v1797 = vsel %vm1690, %v1765, %v1481
        %v1798 = vsel %vm1690, %v1766, %v1483
        %v1799 = vsel %vm1690, %v1767, %v1485
        %v1800 = vsel %vm1690, %v1768, %v1487
        %v1801 = vsel %vm1690, %v1769, %v1489
        %v1802 = vsel %vm1690, %v1770, %v1491
        %v1803 = vsel %vm1690, %v1771, %v1493
        %v1804 = vsel %vm1690, %v1772, %v1495
        %v1805 = vsel %vm1690, %v1773, %v1497
        %v1806 = vsel %vm1690, %v1774, %v1499
        %v1807 = vsel %vm1690, %v1775, %v1501
        %v1808 = vsel %vm1690, %v1776, %v1503
        %v1809 = vsel %vm1690, %v1777, %v1505
        %v1810 = vsel %vm1690, %v1778, %v1507
        %v1811 = vsel %vm1690, %v1779, %v1509
        %v1812 = vsel %vm1690, %v1780, %v1511
        %v1813 = vsel %vm1690, %v1781, %v1513
        %v1814 = vsel %vm1690, %v1782, %v1515
        %v1815 = vsel %vm1690, %v1783, %v1517
        %v1816 = vsel %vm1690, %v1784, %v1519
        %v1817 = vsel %vm1690, %v1785, %v1521
        %v1818 = vsel %vm1690, %v1786, %v1523
        %v1819 = vsel %vm1690, %v1787, %v1525
        %v1820 = vsel %vm1723, %v1788, %v1563
        %v1821 = vsel %vm1723, %v1789, %v1565
        %v1822 = vsel %vm1723, %v1790, %v1567
        %v1823 = vsel %vm1723, %v1791, %v1569
        %v1824 = vsel %vm1723, %v1792, %v1571
        %v1825 = vsel %vm1723, %v1793, %v1573
        %v1826 = vsel %vm1723, %v1794, %v1575
        %v1827 = vsel %vm1723, %v1795, %v1577
        %v1828 = vsel %vm1723, %v1796, %v1579
        %v1829 = vsel %vm1723, %v1797, %v1581
        %v1830 = vsel %vm1723, %v1798, %v1583
        %v1831 = vsel %vm1723, %v1799, %v1585
        %v1832 = vsel %vm1723, %v1800, %v1587
        %v1833 = vsel %vm1723, %v1801, %v1589
        %v1834 = vsel %vm1723, %v1802, %v1591
        %v1835 = vsel %vm1723, %v1803, %v1593
        %v1836 = vsel %vm1723, %v1804, %v1595
        %v1837 = vsel %vm1723, %v1805, %v1597
        %v1838 = vsel %vm1723, %v1806, %v1599
        %v1839 = vsel %vm1723, %v1807, %v1601
        %v1840 = vsel %vm1723, %v1808, %v1603
        %v1841 = vsel %vm1723, %v1809, %v1605
        %v1842 = vsel %vm1723, %v1810, %v1607
        %v1843 = vsel %vm1723, %v1811, %v1609
        %v1844 = vsel %vm1723, %v1812, %v1611
        %v1845 = vsel %vm1723, %v1813, %v1613
        %v1846 = vsel %vm1723, %v1814, %v1615
        %v1847 = vsel %vm1723, %v1815, %v1617
        %v1848 = vsel %vm1723, %v1816, %v1619
        %v1849 = vsel %vm1723, %v1817, %v1621
        %v1850 = vsel %vm1723, %v1818, %v1623
        %v1851 = vsel %vm1723, %v1819, %v1625
        %v1852 = vpack.c.bf16 %v1725, %v1724
        %v1853 = vpack.c.bf16 %v1821, %v1820
        %v1854 = vpack.c.bf16 %v913, %v912
        %v1855 = vpack.c.bf16 %v1727, %v1726
        %v1856 = vpack.c.bf16 %v1823, %v1822
        %v1857 = vpack.c.bf16 %v915, %v914
        %v1858 = vpack.c.bf16 %v1729, %v1728
        %v1859 = vpack.c.bf16 %v1825, %v1824
        %v1860 = vpack.c.bf16 %v917, %v916
        %v1861 = vpack.c.bf16 %v1731, %v1730
        %v1862 = vpack.c.bf16 %v1827, %v1826
        %v1863 = vpack.c.bf16 %v919, %v918
        %v1864 = vpack.c.bf16 %v1733, %v1732
        %v1865 = vpack.c.bf16 %v1829, %v1828
        %v1866 = vpack.c.bf16 %v921, %v920
        %v1867 = vpack.c.bf16 %v1735, %v1734
        %v1868 = vpack.c.bf16 %v1831, %v1830
        %v1869 = vpack.c.bf16 %v923, %v922
        %v1870 = vpack.c.bf16 %v1737, %v1736
        %v1871 = vpack.c.bf16 %v1833, %v1832
        %v1872 = vpack.c.bf16 %v925, %v924
        %v1873 = vpack.c.bf16 %v1739, %v1738
        %v1874 = vpack.c.bf16 %v1835, %v1834
        %v1875 = vpack.c.bf16 %v927, %v926
        %v1876 = vpack.c.bf16 %v1741, %v1740
        %v1877 = vpack.c.bf16 %v1837, %v1836
        %v1878 = vpack.c.bf16 %v929, %v928
        %v1879 = vpack.c.bf16 %v1743, %v1742
        %v1880 = vpack.c.bf16 %v1839, %v1838
        %v1881 = vpack.c.bf16 %v931, %v930
        %v1882 = vpack.c.bf16 %v1745, %v1744
        %v1883 = vpack.c.bf16 %v1841, %v1840
        %v1884 = vpack.c.bf16 %v933, %v932
        %v1885 = vpack.c.bf16 %v1747, %v1746
        %v1886 = vpack.c.bf16 %v1843, %v1842
        %v1887 = vpack.c.bf16 %v935, %v934
        %v1888 = vpack.c.bf16 %v1749, %v1748
        %v1889 = vpack.c.bf16 %v1845, %v1844
        %v1890 = vpack.c.bf16 %v937, %v936
        %v1891 = vpack.c.bf16 %v1751, %v1750
        %v1892 = vpack.c.bf16 %v1847, %v1846
        %v1893 = vpack.c.bf16 %v955, %v938
        %v1894 = vpack.c.bf16 %v1753, %v1752
        %v1895 = vpack.c.bf16 %v1849, %v1848
        %v1896 = vpack.c.bf16 %v973, %v956
        %v1897 = vpack.c.bf16 %v1755, %v1754
        %v1898 = vpack.c.bf16 %v1851, %v1850
        %v1899 = vpack.c.bf16 %v975, %v974
        %v1900 = vld [vmem:[%s3] sm:$0xf]
        %v1901 = vld [vmem:[%s3 + $0x4] sm:$0xf]
        %v1902 = vld [vmem:[%s3 + $0x8] sm:$0xf]
        %v1903 = vld [vmem:[%s3 + $0xc] sm:$0xf]
        %v1904 = vld [vmem:[%s3 + $0x10] sm:$0xf]
        %v1905 = vld [vmem:[%s3 + $0x14] sm:$0xf]
        %v1906 = vld [vmem:[%s3 + $0x18] sm:$0xf]
        %v1907 = vld [vmem:[%s3 + $0x1c] sm:$0xf]
        %v1908 = vld [vmem:[%s3 + $0x20] sm:$0xf]
        %v1909 = vld [vmem:[%s3 + $0x24] sm:$0xf]
        %v1910 = vld [vmem:[%s3 + $0x28] sm:$0xf]
        %v1911 = vld [vmem:[%s3 + $0x2c] sm:$0xf]
        %v1912 = vld [vmem:[%s3 + $0x30] sm:$0xf]
        %v1913 = vld [vmem:[%s3 + $0x34] sm:$0xf]
        %v1914 = vld [vmem:[%s3 + $0x38] sm:$0xf]
        %v1915 = vld [vmem:[%s3 + $0x3c] sm:$0xf]
        %v1916 = vld [vmem:[%s3 + $0x40] sm:$0xf]
        %v1917 = vld [vmem:[%s3 + $0x44] sm:$0xf]
        %v1918 = vld [vmem:[%s3 + $0x48] sm:$0xf]
        %v1919 = vld [vmem:[%s3 + $0x4c] sm:$0xf]
        %v1920 = vld [vmem:[%s3 + $0x50] sm:$0xf]
        %v1921 = vld [vmem:[%s3 + $0x54] sm:$0xf]
        %v1922 = vld [vmem:[%s3 + $0x58] sm:$0xf]
        %v1923 = vld [vmem:[%s3 + $0x5c] sm:$0xf]
        %v1924 = vld [vmem:[%s3 + $0x60] sm:$0xf]
        %v1925 = vld [vmem:[%s3 + $0x64] sm:$0xf]
        %v1926 = vld [vmem:[%s3 + $0x68] sm:$0xf]
        %v1927 = vld [vmem:[%s3 + $0x6c] sm:$0xf]
        %v1928 = vld [vmem:[%s3 + $0x70] sm:$0xf]
        %v1929 = vld [vmem:[%s3 + $0x74] sm:$0xf]
        %v1930 = vld [vmem:[%s3 + $0x78] sm:$0xf]
        %v1931 = vld [vmem:[%s3 + $0x7c] sm:$0xf]
        %v1932 = vld [vmem:[%s3 + $0x80] sm:$0xf]
        %v1933 = vld [vmem:[%s3 + $0x84] sm:$0xf]
        %v1934 = vld [vmem:[%s3 + $0x88] sm:$0xf]
        %v1935 = vld [vmem:[%s3 + $0x8c] sm:$0xf]
        %v1936 = vld [vmem:[%s4] sm:$0x1]
        %v1938 = vlaneseq
        %v1939 = vshrl.u32 %v1938, 7
        %v1940 = vsub.s32 0, %v1939
        %v1941 = vrot.slane %v1936, %v1940
        %v1979 = vunpack.c.l.b16 %v1900
        %v1980 = vunpack.c.l.b16 %v1901
        %v1981 = vunpack.c.l.b16 %v1902
        %v1982 = vunpack.c.l.b16 %v1903
        %v1983 = vunpack.c.l.b16 %v1904
        %v1984 = vunpack.c.l.b16 %v1905
        %v1985 = vunpack.c.l.b16 %v1906
        %v1986 = vunpack.c.l.b16 %v1907
        %v1987 = vunpack.c.l.b16 %v1908
        %v1988 = vunpack.c.l.b16 %v1909
        %v1989 = vunpack.c.l.b16 %v1910
        %v1990 = vunpack.c.l.b16 %v1911
        %v1991 = vunpack.c.l.b16 %v1912
        %v1992 = vunpack.c.l.b16 %v1913
        %v1993 = vunpack.c.l.b16 %v1914
        %v1994 = vunpack.c.l.b16 %v1915
        %v1995 = vunpack.c.l.b16 %v1916
        %v1996 = vunpack.c.l.b16 %v1917
        %v1997 = vunpack.c.l.b16 %v1918
        %v1998 = vunpack.c.l.b16 %v1919
        %v1999 = vunpack.c.l.b16 %v1920
        %v2000 = vunpack.c.l.b16 %v1921
        %v2001 = vunpack.c.l.b16 %v1922
        %v2002 = vunpack.c.l.b16 %v1923
        %v2003 = vunpack.c.l.b16 %v1924
        %v2004 = vunpack.c.l.b16 %v1925
        %v2005 = vunpack.c.l.b16 %v1926
        %v2006 = vunpack.c.l.b16 %v1927
        %v2007 = vunpack.c.l.b16 %v1928
        %v2008 = vunpack.c.l.b16 %v1929
        %v2009 = vunpack.c.l.b16 %v1930
        %v2010 = vunpack.c.l.b16 %v1931
        %v2011 = vunpack.c.l.b16 %v1932
        %v2012 = vunpack.c.l.b16 %v1933
        %v2013 = vunpack.c.l.b16 %v1934
        %v2014 = vunpack.c.l.b16 %v1935
        %v2015 = vpack.c.b16 %v1980, %v1979
        %v2016 = vpack.c.b16 %v1982, %v1981
        %v2017 = vpack.c.b16 %v1984, %v1983
        %v2018 = vpack.c.b16 %v1986, %v1985
        %v2019 = vpack.c.b16 %v1988, %v1987
        %v2020 = vpack.c.b16 %v1990, %v1989
        %v2021 = vpack.c.b16 %v1992, %v1991
        %v2022 = vpack.c.b16 %v1994, %v1993
        %v2023 = vpack.c.b16 %v1996, %v1995
        %v2024 = vpack.c.b16 %v1998, %v1997
        %v2025 = vpack.c.b16 %v2000, %v1999
        %v2026 = vpack.c.b16 %v2002, %v2001
        %v2027 = vpack.c.b16 %v2004, %v2003
        %v2028 = vpack.c.b16 %v2006, %v2005
        %v2029 = vpack.c.b16 %v2008, %v2007
        %v2030 = vpack.c.b16 %v2010, %v2009
        %v2031 = vpack.c.b16 %v2012, %v2011
        %v2032 = vpack.c.b16 %v2014, %v2013
        %v2052 = vsel %vm670, %v1854, 0
        %v2055 = vsel %vm670, %v1857, 0
        %v2058 = vsel %vm670, %v1860, 0
        %v2061 = vsel %vm670, %v1863, 0
        %v2064 = vsel %vm670, %v1866, 0
        %v2067 = vsel %vm670, %v1869, 0
        %v2070 = vsel %vm670, %v1872, 0
        %v2073 = vsel %vm670, %v1875, 0
        %v2076 = vsel %vm670, %v1878, 0
        %v2079 = vsel %vm670, %v1881, 0
        %v2082 = vsel %vm670, %v1884, 0
        %v2085 = vsel %vm670, %v1887, 0
        %v2088 = vsel %vm670, %v1890, 0
        %v2091 = vsel %vm670, %v1893, 0
        %v2094 = vsel %vm670, %v1896, 0
        %v2097 = vsel %vm670, %v1899, 0
        %2099 = vmatprep.subr.bf16.mxu0 0
        %2100 = vmatpush1.bf16.msra.mxu0 %v2015
        %2101 = vmatprep.subr.bf16.mxu0 0
        %2102 = vmatpush1.bf16.msra.mxu0 %v2016
        %2103 = vmatprep.subr.bf16.mxu0 0
        %2104 = vmatpush1.bf16.msra.mxu0 %v2017
        %2105 = vmatprep.subr.bf16.mxu0 0
        %2106 = vmatpush1.bf16.msra.mxu0 %v2018
        %2107 = vmatprep.subr.bf16.mxu0 0
        %2108 = vmatpush1.bf16.msra.mxu0 %v2019
        %2109 = vmatprep.subr.bf16.mxu0 0
        %2110 = vmatpush1.bf16.msra.mxu0 %v2020
        %2111 = vmatprep.subr.bf16.mxu0 0
        %2112 = vmatpush1.bf16.msra.mxu0 %v2021
        %2113 = vmatprep.subr.bf16.mxu0 0
        %2114 = vmatpush1.bf16.msra.mxu0 %v2022
        %2115 = vmatprep.subr.bf16.mxu0 0
        %2116 = vmatpush1.bf16.msra.mxu0 %v2023
        %2117 = vmatprep.subr.bf16.mxu0 0
        %2118 = vmatpush1.bf16.msra.mxu0 %v2024
        %2119 = vmatprep.subr.bf16.mxu0 0
        %2120 = vmatpush1.bf16.msra.mxu0 %v2025
        %2121 = vmatprep.subr.bf16.mxu0 0
        %2122 = vmatpush1.bf16.msra.mxu0 %v2026
        %2123 = vmatprep.subr.bf16.mxu0 0
        %2124 = vmatpush1.bf16.msra.mxu0 %v2027
        %2125 = vmatprep.subr.bf16.mxu0 0
        %2126 = vmatpush1.bf16.msra.mxu0 %v2028
        %2127 = vmatprep.subr.bf16.mxu0 0
        %2128 = vmatpush1.bf16.msra.mxu0 %v2029
        %2129 = vmatprep.subr.bf16.mxu0 0
        %2130 = vmatpush1.bf16.msra.mxu0 %v2030
        %2131 = vmatprep.mubr.bf16.mxu0 %v1853
        %2132 = vmatmul.mubr.bf16.gmra.mrb[0].mxu0 %v1852
        %v2133 = vpop.f32.mrb[0].mxu0
        %v2134 = vadd.f32 %v1941, %v2133
        %v2135 = vpop.f32.mrb[0].mxu0
        %v2136 = vpop.f32.mrb[0].mxu0
        %v2137 = vadd.f32 %v1941, %v2136
        %v2138 = vpop.f32.mrb[0].mxu0
        %2139 = vmatprep.mubr.bf16.mxu0 %v1856
        %2140 = vmatmul.mubr.bf16.gmra.mrb[0].mxu0 %v1855
        %v2141 = vpop.f32.mrb[0].mxu0
        %v2142 = vadd.f32 %v1941, %v2141
        %v2143 = vpop.f32.mrb[0].mxu0
        %v2144 = vpop.f32.mrb[0].mxu0
        %v2145 = vadd.f32 %v1941, %v2144
        %v2146 = vpop.f32.mrb[0].mxu0
        %2147 = vmatprep.mubr.bf16.mxu0 %v1859
        %2148 = vmatmul.mubr.bf16.gmra.mrb[0].mxu0 %v1858
        %v2149 = vpop.f32.mrb[0].mxu0
        %v2150 = vadd.f32 %v1941, %v2149
        %v2151 = vpop.f32.mrb[0].mxu0
        %v2152 = vpop.f32.mrb[0].mxu0
        %v2153 = vadd.f32 %v1941, %v2152
        %v2154 = vpop.f32.mrb[0].mxu0
        %2155 = vmatprep.mubr.bf16.mxu0 %v1862
        %2156 = vmatmul.mubr.bf16.gmra.mrb[0].mxu0 %v1861
        %v2157 = vpop.f32.mrb[0].mxu0
        %v2158 = vadd.f32 %v1941, %v2157
        %v2159 = vpop.f32.mrb[0].mxu0
        %v2160 = vpop.f32.mrb[0].mxu0
        %v2161 = vadd.f32 %v1941, %v2160
        %v2162 = vpop.f32.mrb[0].mxu0
        %2163 = vmatprep.mubr.bf16.mxu0 %v1865
        %2164 = vmatmul.mubr.bf16.gmra.mrb[0].mxu0 %v1864
        %v2165 = vpop.f32.mrb[0].mxu0
        %v2166 = vadd.f32 %v1941, %v2165
        %v2167 = vpop.f32.mrb[0].mxu0
        %v2168 = vpop.f32.mrb[0].mxu0
        %v2169 = vadd.f32 %v1941, %v2168
        %v2170 = vpop.f32.mrb[0].mxu0
        %2171 = vmatprep.mubr.bf16.mxu0 %v1868
        %2172 = vmatmul.mubr.bf16.gmra.mrb[0].mxu0 %v1867
        %v2173 = vpop.f32.mrb[0].mxu0
        %v2174 = vadd.f32 %v1941, %v2173
        %v2175 = vpop.f32.mrb[0].mxu0
        %v2176 = vpop.f32.mrb[0].mxu0
        %v2177 = vadd.f32 %v1941, %v2176
        %v2178 = vpop.f32.mrb[0].mxu0
        %2179 = vmatprep.mubr.bf16.mxu0 %v1871
        %2180 = vmatmul.mubr.bf16.gmra.mrb[0].mxu0 %v1870
        %v2181 = vpop.f32.mrb[0].mxu0
        %v2182 = vadd.f32 %v1941, %v2181
        %v2183 = vpop.f32.mrb[0].mxu0
        %v2184 = vpop.f32.mrb[0].mxu0
        %v2185 = vadd.f32 %v1941, %v2184
        %v2186 = vpop.f32.mrb[0].mxu0
        %2187 = vmatprep.mubr.bf16.mxu0 %v1874
        %2188 = vmatmul.mubr.bf16.gmra.mrb[0].mxu0 %v1873
        %v2189 = vpop.f32.mrb[0].mxu0
        %v2190 = vadd.f32 %v1941, %v2189
        %v2191 = vpop.f32.mrb[0].mxu0
        %v2192 = vpop.f32.mrb[0].mxu0
        %v2193 = vadd.f32 %v1941, %v2192
        %v2194 = vpop.f32.mrb[0].mxu0
        %2195 = vmatprep.mubr.bf16.mxu0 %v1877
        %2196 = vmatmul.mubr.bf16.gmra.mrb[0].mxu0 %v1876
        %v2197 = vpop.f32.mrb[0].mxu0
        %v2198 = vadd.f32 %v1941, %v2197
        %v2199 = vpop.f32.mrb[0].mxu0
        %v2200 = vpop.f32.mrb[0].mxu0
        %v2201 = vadd.f32 %v1941, %v2200
        %v2202 = vpop.f32.mrb[0].mxu0
        %2203 = vmatprep.mubr.bf16.mxu0 %v1880
        %2204 = vmatmul.mubr.bf16.gmra.mrb[0].mxu0 %v1879
        %v2205 = vpop.f32.mrb[0].mxu0
        %v2206 = vadd.f32 %v1941, %v2205
        %v2207 = vpop.f32.mrb[0].mxu0
        %v2208 = vpop.f32.mrb[0].mxu0
        %v2209 = vadd.f32 %v1941, %v2208
        %v2210 = vpop.f32.mrb[0].mxu0
        %2211 = vmatprep.mubr.bf16.mxu0 %v1883
        %2212 = vmatmul.mubr.bf16.gmra.mrb[0].mxu0 %v1882
        %v2213 = vpop.f32.mrb[0].mxu0
        %v2214 = vadd.f32 %v1941, %v2213
        %v2215 = vpop.f32.mrb[0].mxu0
        %v2216 = vpop.f32.mrb[0].mxu0
        %v2217 = vadd.f32 %v1941, %v2216
        %v2218 = vpop.f32.mrb[0].mxu0
        %2219 = vmatprep.mubr.bf16.mxu0 %v1886
        %2220 = vmatmul.mubr.bf16.gmra.mrb[0].mxu0 %v1885
        %v2221 = vpop.f32.mrb[0].mxu0
        %v2222 = vadd.f32 %v1941, %v2221
        %v2223 = vpop.f32.mrb[0].mxu0
        %v2224 = vpop.f32.mrb[0].mxu0
        %v2225 = vadd.f32 %v1941, %v2224
        %v2226 = vpop.f32.mrb[0].mxu0
        %2227 = vmatprep.mubr.bf16.mxu0 %v1889
        %2228 = vmatmul.mubr.bf16.gmra.mrb[0].mxu0 %v1888
        %v2229 = vpop.f32.mrb[0].mxu0
        %v2230 = vadd.f32 %v1941, %v2229
        %v2231 = vpop.f32.mrb[0].mxu0
        %v2232 = vpop.f32.mrb[0].mxu0
        %v2233 = vadd.f32 %v1941, %v2232
        %v2234 = vpop.f32.mrb[0].mxu0
        %2235 = vmatprep.mubr.bf16.mxu0 %v1892
        %2236 = vmatmul.mubr.bf16.gmra.mrb[0].mxu0 %v1891
        %v2237 = vpop.f32.mrb[0].mxu0
        %v2238 = vadd.f32 %v1941, %v2237
        %v2239 = vpop.f32.mrb[0].mxu0
        %v2240 = vpop.f32.mrb[0].mxu0
        %v2241 = vadd.f32 %v1941, %v2240
        %v2242 = vpop.f32.mrb[0].mxu0
        %2243 = vmatprep.mubr.bf16.mxu0 %v1895
        %2244 = vmatmul.mubr.bf16.gmra.mrb[0].mxu0 %v1894
        %v2245 = vpop.f32.mrb[0].mxu0
        %v2246 = vadd.f32 %v1941, %v2245
        %v2247 = vpop.f32.mrb[0].mxu0
        %v2248 = vpop.f32.mrb[0].mxu0
        %v2249 = vadd.f32 %v1941, %v2248
        %v2250 = vpop.f32.mrb[0].mxu0
        %2251 = vmatprep.mubr.bf16.mxu0 %v1898
        %2252 = vmatmul.mubr.bf16.gmra.mrb[0].mxu0 %v1897
        %v2253 = vpop.f32.mrb[0].mxu0
        %v2254 = vadd.f32 %v1941, %v2253
        %v2255 = vpop.f32.mrb[0].mxu0
        %v2256 = vpop.f32.mrb[0].mxu0
        %v2257 = vadd.f32 %v1941, %v2256
        %v2258 = vpop.f32.mrb[0].mxu0
        %2259 = vdwg.mxu0
        %2260 = vmatprep.subr.bf16.mxu0 0
        %2261 = vmatpush1.bf16.msra.mxu0 %v2031
        %2262 = vmatprep.subr.bf16.mxu0 0
        %2263 = vmatpush1.bf16.msra.mxu0 %v2032
        %2264 = vmatprep.subr.bf16.mxu0 0
        %2265 = vmatpush1.bf16.msra.mxu0 0
        %2266 = vmatprep.subr.bf16.mxu0 0
        %2267 = vmatpush1.bf16.msra.mxu0 0
        %2268 = vmatprep.subr.bf16.mxu0 0
        %2269 = vmatpush1.bf16.msra.mxu0 0
        %2270 = vmatprep.subr.bf16.mxu0 0
        %2271 = vmatpush1.bf16.msra.mxu0 0
        %2272 = vmatprep.subr.bf16.mxu0 0
        %2273 = vmatpush1.bf16.msra.mxu0 0
        %2274 = vmatprep.subr.bf16.mxu0 0
        %2275 = vmatpush1.bf16.msra.mxu0 0
        %2276 = vmatprep.subr.bf16.mxu0 0
        %2277 = vmatpush1.bf16.msra.mxu0 0
        %2278 = vmatprep.subr.bf16.mxu0 0
        %2279 = vmatpush1.bf16.msra.mxu0 0
        %2280 = vmatprep.subr.bf16.mxu0 0
        %2281 = vmatpush1.bf16.msra.mxu0 0
        %2282 = vmatprep.subr.bf16.mxu0 0
        %2283 = vmatpush1.bf16.msra.mxu0 0
        %2284 = vmatprep.subr.bf16.mxu0 0
        %2285 = vmatpush1.bf16.msra.mxu0 0
        %2286 = vmatprep.subr.bf16.mxu0 0
        %2287 = vmatpush1.bf16.msra.mxu0 0
        %2288 = vmatprep.subr.bf16.mxu0 0
        %2289 = vmatpush1.bf16.msra.mxu0 0
        %2290 = vmatprep.subr.bf16.mxu0 0
        %2291 = vmatpush1.bf16.msra.mxu0 0
        %2292 = vmatprep.mubr.bf16.mxu0 0
        %2293 = vmatmul.mubr.bf16.gmra.mrb[0].mxu0 %v2052
        %v2294 = vpop.f32.mrb[0].mxu0
        %v2295 = vadd.f32 %v2134, %v2294
        %v2296 = vpop.f32.mrb[0].mxu0
        %v2297 = vpop.f32.mrb[0].mxu0
        %v2298 = vadd.f32 %v2137, %v2297
        %v2299 = vpop.f32.mrb[0].mxu0
        %2300 = vmatprep.mubr.bf16.mxu0 0
        %2301 = vmatmul.mubr.bf16.gmra.mrb[0].mxu0 %v2055
        %v2302 = vpop.f32.mrb[0].mxu0
        %v2303 = vadd.f32 %v2142, %v2302
        %v2304 = vpop.f32.mrb[0].mxu0
        %v2305 = vpop.f32.mrb[0].mxu0
        %v2306 = vadd.f32 %v2145, %v2305
        %v2307 = vpop.f32.mrb[0].mxu0
        %2308 = vmatprep.mubr.bf16.mxu0 0
        %2309 = vmatmul.mubr.bf16.gmra.mrb[0].mxu0 %v2058
        %v2310 = vpop.f32.mrb[0].mxu0
        %v2311 = vadd.f32 %v2150, %v2310
        %v2312 = vpop.f32.mrb[0].mxu0
        %v2313 = vpop.f32.mrb[0].mxu0
        %v2314 = vadd.f32 %v2153, %v2313
        %v2315 = vpop.f32.mrb[0].mxu0
        %2316 = vmatprep.mubr.bf16.mxu0 0
        %2317 = vmatmul.mubr.bf16.gmra.mrb[0].mxu0 %v2061
        %v2318 = vpop.f32.mrb[0].mxu0
        %v2319 = vadd.f32 %v2158, %v2318
        %v2320 = vpop.f32.mrb[0].mxu0
        %v2321 = vpop.f32.mrb[0].mxu0
        %v2322 = vadd.f32 %v2161, %v2321
        %v2323 = vpop.f32.mrb[0].mxu0
        %2324 = vmatprep.mubr.bf16.mxu0 0
        %2325 = vmatmul.mubr.bf16.gmra.mrb[0].mxu0 %v2064
        %v2326 = vpop.f32.mrb[0].mxu0
        %v2327 = vadd.f32 %v2166, %v2326
        %v2328 = vpop.f32.mrb[0].mxu0
        %v2329 = vpop.f32.mrb[0].mxu0
        %v2330 = vadd.f32 %v2169, %v2329
        %v2331 = vpop.f32.mrb[0].mxu0
        %2332 = vmatprep.mubr.bf16.mxu0 0
        %2333 = vmatmul.mubr.bf16.gmra.mrb[0].mxu0 %v2067
        %v2334 = vpop.f32.mrb[0].mxu0
        %v2335 = vadd.f32 %v2174, %v2334
        %v2336 = vpop.f32.mrb[0].mxu0
        %v2337 = vpop.f32.mrb[0].mxu0
        %v2338 = vadd.f32 %v2177, %v2337
        %v2339 = vpop.f32.mrb[0].mxu0
        %2340 = vmatprep.mubr.bf16.mxu0 0
        %2341 = vmatmul.mubr.bf16.gmra.mrb[0].mxu0 %v2070
        %v2342 = vpop.f32.mrb[0].mxu0
        %v2343 = vadd.f32 %v2182, %v2342
        %v2344 = vpop.f32.mrb[0].mxu0
        %v2345 = vpop.f32.mrb[0].mxu0
        %v2346 = vadd.f32 %v2185, %v2345
        %v2347 = vpop.f32.mrb[0].mxu0
        %2348 = vmatprep.mubr.bf16.mxu0 0
        %2349 = vmatmul.mubr.bf16.gmra.mrb[0].mxu0 %v2073
        %v2350 = vpop.f32.mrb[0].mxu0
        %v2351 = vadd.f32 %v2190, %v2350
        %v2352 = vpop.f32.mrb[0].mxu0
        %v2353 = vpop.f32.mrb[0].mxu0
        %v2354 = vadd.f32 %v2193, %v2353
        %v2355 = vpop.f32.mrb[0].mxu0
        %2356 = vmatprep.mubr.bf16.mxu0 0
        %2357 = vmatmul.mubr.bf16.gmra.mrb[0].mxu0 %v2076
        %v2358 = vpop.f32.mrb[0].mxu0
        %v2359 = vadd.f32 %v2198, %v2358
        %v2360 = vpop.f32.mrb[0].mxu0
        %v2361 = vpop.f32.mrb[0].mxu0
        %v2362 = vadd.f32 %v2201, %v2361
        %v2363 = vpop.f32.mrb[0].mxu0
        %2364 = vmatprep.mubr.bf16.mxu0 0
        %2365 = vmatmul.mubr.bf16.gmra.mrb[0].mxu0 %v2079
        %v2366 = vpop.f32.mrb[0].mxu0
        %v2367 = vadd.f32 %v2206, %v2366
        %v2368 = vpop.f32.mrb[0].mxu0
        %v2369 = vpop.f32.mrb[0].mxu0
        %v2370 = vadd.f32 %v2209, %v2369
        %v2371 = vpop.f32.mrb[0].mxu0
        %2372 = vmatprep.mubr.bf16.mxu0 0
        %2373 = vmatmul.mubr.bf16.gmra.mrb[0].mxu0 %v2082
        %v2374 = vpop.f32.mrb[0].mxu0
        %v2375 = vadd.f32 %v2214, %v2374
        %v2376 = vpop.f32.mrb[0].mxu0
        %v2377 = vpop.f32.mrb[0].mxu0
        %v2378 = vadd.f32 %v2217, %v2377
        %v2379 = vpop.f32.mrb[0].mxu0
        %2380 = vmatprep.mubr.bf16.mxu0 0
        %2381 = vmatmul.mubr.bf16.gmra.mrb[0].mxu0 %v2085
        %v2382 = vpop.f32.mrb[0].mxu0
        %v2383 = vadd.f32 %v2222, %v2382
        %v2384 = vpop.f32.mrb[0].mxu0
        %v2385 = vpop.f32.mrb[0].mxu0
        %v2386 = vadd.f32 %v2225, %v2385
        %v2387 = vpop.f32.mrb[0].mxu0
        %2388 = vmatprep.mubr.bf16.mxu0 0
        %2389 = vmatmul.mubr.bf16.gmra.mrb[0].mxu0 %v2088
        %v2390 = vpop.f32.mrb[0].mxu0
        %v2391 = vadd.f32 %v2230, %v2390
        %v2392 = vpop.f32.mrb[0].mxu0
        %v2393 = vpop.f32.mrb[0].mxu0
        %v2394 = vadd.f32 %v2233, %v2393
        %v2395 = vpop.f32.mrb[0].mxu0
        %2396 = vmatprep.mubr.bf16.mxu0 0
        %2397 = vmatmul.mubr.bf16.gmra.mrb[0].mxu0 %v2091
        %v2398 = vpop.f32.mrb[0].mxu0
        %v2399 = vadd.f32 %v2238, %v2398
        %v2400 = vpop.f32.mrb[0].mxu0
        %v2401 = vpop.f32.mrb[0].mxu0
        %v2402 = vadd.f32 %v2241, %v2401
        %v2403 = vpop.f32.mrb[0].mxu0
        %2404 = vmatprep.mubr.bf16.mxu0 0
        %2405 = vmatmul.mubr.bf16.gmra.mrb[0].mxu0 %v2094
        %v2406 = vpop.f32.mrb[0].mxu0
        %v2407 = vadd.f32 %v2246, %v2406
        %v2408 = vpop.f32.mrb[0].mxu0
        %v2409 = vpop.f32.mrb[0].mxu0
        %v2410 = vadd.f32 %v2249, %v2409
        %v2411 = vpop.f32.mrb[0].mxu0
        %2412 = vmatprep.mubr.bf16.mxu0 0
        %2413 = vmatmul.mubr.bf16.gmra.mrb[0].mxu0 %v2097
        %v2414 = vpop.f32.mrb[0].mxu0
        %v2415 = vadd.f32 %v2254, %v2414
        %v2416 = vpop.f32.mrb[0].mxu0
        %v2417 = vpop.f32.mrb[0].mxu0
        %v2418 = vadd.f32 %v2257, %v2417
        %v2419 = vpop.f32.mrb[0].mxu0
        %2420 = vdwg.mxu0
        %v2421 = vmax.f32 %v2295, 0.0
        %v2422 = vmax.f32 %v2298, 0.0
        %v2423 = vmax.f32 %v2303, 0.0
        %v2424 = vmax.f32 %v2306, 0.0
        %v2425 = vmax.f32 %v2311, 0.0
        %v2426 = vmax.f32 %v2314, 0.0
        %v2427 = vmax.f32 %v2319, 0.0
        %v2428 = vmax.f32 %v2322, 0.0
        %v2429 = vmax.f32 %v2327, 0.0
        %v2430 = vmax.f32 %v2330, 0.0
        %v2431 = vmax.f32 %v2335, 0.0
        %v2432 = vmax.f32 %v2338, 0.0
        %v2433 = vmax.f32 %v2343, 0.0
        %v2434 = vmax.f32 %v2346, 0.0
        %v2435 = vmax.f32 %v2351, 0.0
        %v2436 = vmax.f32 %v2354, 0.0
        %v2437 = vmax.f32 %v2359, 0.0
        %v2438 = vmax.f32 %v2362, 0.0
        %v2439 = vmax.f32 %v2367, 0.0
        %v2440 = vmax.f32 %v2370, 0.0
        %v2441 = vmax.f32 %v2375, 0.0
        %v2442 = vmax.f32 %v2378, 0.0
        %v2443 = vmax.f32 %v2383, 0.0
        %v2444 = vmax.f32 %v2386, 0.0
        %v2445 = vmax.f32 %v2391, 0.0
        %v2446 = vmax.f32 %v2394, 0.0
        %v2447 = vmax.f32 %v2399, 0.0
        %v2448 = vmax.f32 %v2402, 0.0
        %v2449 = vmax.f32 %v2407, 0.0
        %v2450 = vmax.f32 %v2410, 0.0
        %v2451 = vmax.f32 %v2415, 0.0
        %v2452 = vmax.f32 %v2418, 0.0
        %v2453 = vpack.c.bf16 %v2422, %v2421
        %v2454 = vpack.c.bf16 %v2424, %v2423
        %v2455 = vpack.c.bf16 %v2426, %v2425
        %v2456 = vpack.c.bf16 %v2428, %v2427
        %v2457 = vpack.c.bf16 %v2430, %v2429
        %v2458 = vpack.c.bf16 %v2432, %v2431
        %v2459 = vpack.c.bf16 %v2434, %v2433
        %v2460 = vpack.c.bf16 %v2436, %v2435
        %v2461 = vpack.c.bf16 %v2438, %v2437
        %v2462 = vpack.c.bf16 %v2440, %v2439
        %v2463 = vpack.c.bf16 %v2442, %v2441
        %v2464 = vpack.c.bf16 %v2444, %v2443
        %v2465 = vpack.c.bf16 %v2446, %v2445
        %v2466 = vpack.c.bf16 %v2448, %v2447
        %v2467 = vpack.c.bf16 %v2450, %v2449
        %v2468 = vpack.c.bf16 %v2452, %v2451
        %v2469 = vld [vmem:[%s5] sm:$0xf]
        %v2470 = vld [vmem:[%s5 + $0x4] sm:$0xf]
        %v2471 = vld [vmem:[%s5 + $0x8] sm:$0xf]
        %v2472 = vld [vmem:[%s5 + $0xc] sm:$0xf]
        %v2473 = vld [vmem:[%s6] sm:$0x1]
        %v2475 = vlaneseq
        %v2476 = vshrl.u32 %v2475, 7
        %v2477 = vsub.s32 0, %v2476
        %v2478 = vrot.slane %v2473, %v2477
        %v2484 = vunpack.c.l.b16 %v2469
        %v2485 = vunpack.c.l.b16 %v2470
        %v2486 = vunpack.c.l.b16 %v2471
        %v2487 = vunpack.c.l.b16 %v2472
        %v2488 = vpack.c.b16 %v2485, %v2484
        %v2489 = vpack.c.b16 %v2487, %v2486
        %v2493 = vsel %vm670, %v2453, 0
        %v2496 = vsel %vm670, %v2454, 0
        %v2499 = vsel %vm670, %v2455, 0
        %v2502 = vsel %vm670, %v2456, 0
        %v2505 = vsel %vm670, %v2457, 0
        %v2508 = vsel %vm670, %v2458, 0
        %v2511 = vsel %vm670, %v2459, 0
        %v2514 = vsel %vm670, %v2460, 0
        %v2517 = vsel %vm670, %v2461, 0
        %v2520 = vsel %vm670, %v2462, 0
        %v2523 = vsel %vm670, %v2463, 0
        %v2526 = vsel %vm670, %v2464, 0
        %v2529 = vsel %vm670, %v2465, 0
        %v2532 = vsel %vm670, %v2466, 0
        %v2535 = vsel %vm670, %v2467, 0
        %v2538 = vsel %vm670, %v2468, 0
        %2540 = vmatprep.subr.bf16.mxu0 0
        %2541 = vmatpush1.bf16.msra.mxu0 %v2488
        %2542 = vmatprep.subr.bf16.mxu0 0
        %2543 = vmatpush1.bf16.msra.mxu0 %v2489
        %2544 = vmatprep.subr.bf16.mxu0 0
        %2545 = vmatpush1.bf16.msra.mxu0 0
        %2546 = vmatprep.subr.bf16.mxu0 0
        %2547 = vmatpush1.bf16.msra.mxu0 0
        %2548 = vmatprep.subr.bf16.mxu0 0
        %2549 = vmatpush1.bf16.msra.mxu0 0
        %2550 = vmatprep.subr.bf16.mxu0 0
        %2551 = vmatpush1.bf16.msra.mxu0 0
        %2552 = vmatprep.subr.bf16.mxu0 0
        %2553 = vmatpush1.bf16.msra.mxu0 0
        %2554 = vmatprep.subr.bf16.mxu0 0
        %2555 = vmatpush1.bf16.msra.mxu0 0
        %2556 = vmatprep.subr.bf16.mxu0 0
        %2557 = vmatpush1.bf16.msra.mxu0 0
        %2558 = vmatprep.subr.bf16.mxu0 0
        %2559 = vmatpush1.bf16.msra.mxu0 0
        %2560 = vmatprep.subr.bf16.mxu0 0
        %2561 = vmatpush1.bf16.msra.mxu0 0
        %2562 = vmatprep.subr.bf16.mxu0 0
        %2563 = vmatpush1.bf16.msra.mxu0 0
        %2564 = vmatprep.subr.bf16.mxu0 0
        %2565 = vmatpush1.bf16.msra.mxu0 0
        %2566 = vmatprep.subr.bf16.mxu0 0
        %2567 = vmatpush1.bf16.msra.mxu0 0
        %2568 = vmatprep.subr.bf16.mxu0 0
        %2569 = vmatpush1.bf16.msra.mxu0 0
        %2570 = vmatprep.subr.bf16.mxu0 0
        %2571 = vmatpush1.bf16.msra.mxu0 0
        %2572 = vmatprep.mubr.bf16.mxu0 0
        %2573 = vmatmul.mubr.bf16.gmra.mrb[0].mxu0 %v2493
        %v2574 = vpop.f32.mrb[0].mxu0
        %v2575 = vadd.f32 %v2478, %v2574
        %v2576 = vpop.f32.mrb[0].mxu0
        %v2577 = vpop.f32.mrb[0].mxu0
        %v2578 = vadd.f32 %v2478, %v2577
        %v2579 = vpop.f32.mrb[0].mxu0
        %2580 = vmatprep.mubr.bf16.mxu0 0
        %2581 = vmatmul.mubr.bf16.gmra.mrb[0].mxu0 %v2496
        %v2582 = vpop.f32.mrb[0].mxu0
        %v2583 = vadd.f32 %v2478, %v2582
        %v2584 = vpop.f32.mrb[0].mxu0
        %v2585 = vpop.f32.mrb[0].mxu0
        %v2586 = vadd.f32 %v2478, %v2585
        %v2587 = vpop.f32.mrb[0].mxu0
        %2588 = vmatprep.mubr.bf16.mxu0 0
        %2589 = vmatmul.mubr.bf16.gmra.mrb[0].mxu0 %v2499
        %v2590 = vpop.f32.mrb[0].mxu0
        %v2591 = vadd.f32 %v2478, %v2590
        %v2592 = vpop.f32.mrb[0].mxu0
        %v2593 = vpop.f32.mrb[0].mxu0
        %v2594 = vadd.f32 %v2478, %v2593
        %v2595 = vpop.f32.mrb[0].mxu0
        %2596 = vmatprep.mubr.bf16.mxu0 0
        %2597 = vmatmul.mubr.bf16.gmra.mrb[0].mxu0 %v2502
        %v2598 = vpop.f32.mrb[0].mxu0
        %v2599 = vadd.f32 %v2478, %v2598
        %v2600 = vpop.f32.mrb[0].mxu0
        %v2601 = vpop.f32.mrb[0].mxu0
        %v2602 = vadd.f32 %v2478, %v2601
        %v2603 = vpop.f32.mrb[0].mxu0
        %2604 = vmatprep.mubr.bf16.mxu0 0
        %2605 = vmatmul.mubr.bf16.gmra.mrb[0].mxu0 %v2505
        %v2606 = vpop.f32.mrb[0].mxu0
        %v2607 = vadd.f32 %v2478, %v2606
        %v2608 = vpop.f32.mrb[0].mxu0
        %v2609 = vpop.f32.mrb[0].mxu0
        %v2610 = vadd.f32 %v2478, %v2609
        %v2611 = vpop.f32.mrb[0].mxu0
        %2612 = vmatprep.mubr.bf16.mxu0 0
        %2613 = vmatmul.mubr.bf16.gmra.mrb[0].mxu0 %v2508
        %v2614 = vpop.f32.mrb[0].mxu0
        %v2615 = vadd.f32 %v2478, %v2614
        %v2616 = vpop.f32.mrb[0].mxu0
        %v2617 = vpop.f32.mrb[0].mxu0
        %v2618 = vadd.f32 %v2478, %v2617
        %v2619 = vpop.f32.mrb[0].mxu0
        %2620 = vmatprep.mubr.bf16.mxu0 0
        %2621 = vmatmul.mubr.bf16.gmra.mrb[0].mxu0 %v2511
        %v2622 = vpop.f32.mrb[0].mxu0
        %v2623 = vadd.f32 %v2478, %v2622
        %v2624 = vpop.f32.mrb[0].mxu0
        %v2625 = vpop.f32.mrb[0].mxu0
        %v2626 = vadd.f32 %v2478, %v2625
        %v2627 = vpop.f32.mrb[0].mxu0
        %2628 = vmatprep.mubr.bf16.mxu0 0
        %2629 = vmatmul.mubr.bf16.gmra.mrb[0].mxu0 %v2514
        %v2630 = vpop.f32.mrb[0].mxu0
        %v2631 = vadd.f32 %v2478, %v2630
        %v2632 = vpop.f32.mrb[0].mxu0
        %v2633 = vpop.f32.mrb[0].mxu0
        %v2634 = vadd.f32 %v2478, %v2633
        %v2635 = vpop.f32.mrb[0].mxu0
        %2636 = vmatprep.mubr.bf16.mxu0 0
        %2637 = vmatmul.mubr.bf16.gmra.mrb[0].mxu0 %v2517
        %v2638 = vpop.f32.mrb[0].mxu0
        %v2639 = vadd.f32 %v2478, %v2638
        %v2640 = vpop.f32.mrb[0].mxu0
        %v2641 = vpop.f32.mrb[0].mxu0
        %v2642 = vadd.f32 %v2478, %v2641
        %v2643 = vpop.f32.mrb[0].mxu0
        %2644 = vmatprep.mubr.bf16.mxu0 0
        %2645 = vmatmul.mubr.bf16.gmra.mrb[0].mxu0 %v2520
        %v2646 = vpop.f32.mrb[0].mxu0
        %v2647 = vadd.f32 %v2478, %v2646
        %v2648 = vpop.f32.mrb[0].mxu0
        %v2649 = vpop.f32.mrb[0].mxu0
        %v2650 = vadd.f32 %v2478, %v2649
        %v2651 = vpop.f32.mrb[0].mxu0
        %2652 = vmatprep.mubr.bf16.mxu0 0
        %2653 = vmatmul.mubr.bf16.gmra.mrb[0].mxu0 %v2523
        %v2654 = vpop.f32.mrb[0].mxu0
        %v2655 = vadd.f32 %v2478, %v2654
        %v2656 = vpop.f32.mrb[0].mxu0
        %v2657 = vpop.f32.mrb[0].mxu0
        %v2658 = vadd.f32 %v2478, %v2657
        %v2659 = vpop.f32.mrb[0].mxu0
        %2660 = vmatprep.mubr.bf16.mxu0 0
        %2661 = vmatmul.mubr.bf16.gmra.mrb[0].mxu0 %v2526
        %v2662 = vpop.f32.mrb[0].mxu0
        %v2663 = vadd.f32 %v2478, %v2662
        %v2664 = vpop.f32.mrb[0].mxu0
        %v2665 = vpop.f32.mrb[0].mxu0
        %v2666 = vadd.f32 %v2478, %v2665
        %v2667 = vpop.f32.mrb[0].mxu0
        %2668 = vmatprep.mubr.bf16.mxu0 0
        %2669 = vmatmul.mubr.bf16.gmra.mrb[0].mxu0 %v2529
        %v2670 = vpop.f32.mrb[0].mxu0
        %v2671 = vadd.f32 %v2478, %v2670
        %v2672 = vpop.f32.mrb[0].mxu0
        %v2673 = vpop.f32.mrb[0].mxu0
        %v2674 = vadd.f32 %v2478, %v2673
        %v2675 = vpop.f32.mrb[0].mxu0
        %2676 = vmatprep.mubr.bf16.mxu0 0
        %2677 = vmatmul.mubr.bf16.gmra.mrb[0].mxu0 %v2532
        %v2678 = vpop.f32.mrb[0].mxu0
        %v2679 = vadd.f32 %v2478, %v2678
        %v2680 = vpop.f32.mrb[0].mxu0
        %v2681 = vpop.f32.mrb[0].mxu0
        %v2682 = vadd.f32 %v2478, %v2681
        %v2683 = vpop.f32.mrb[0].mxu0
        %2684 = vmatprep.mubr.bf16.mxu0 0
        %2685 = vmatmul.mubr.bf16.gmra.mrb[0].mxu0 %v2535
        %v2686 = vpop.f32.mrb[0].mxu0
        %v2687 = vadd.f32 %v2478, %v2686
        %v2688 = vpop.f32.mrb[0].mxu0
        %v2689 = vpop.f32.mrb[0].mxu0
        %v2690 = vadd.f32 %v2478, %v2689
        %v2691 = vpop.f32.mrb[0].mxu0
        %2692 = vmatprep.mubr.bf16.mxu0 0
        %2693 = vmatmul.mubr.bf16.gmra.mrb[0].mxu0 %v2538
        %v2694 = vpop.f32.mrb[0].mxu0
        %v2695 = vadd.f32 %v2478, %v2694
        %v2696 = vpop.f32.mrb[0].mxu0
        %v2697 = vpop.f32.mrb[0].mxu0
        %v2698 = vadd.f32 %v2478, %v2697
        %v2699 = vpop.f32.mrb[0].mxu0
        %2700 = vdwg.mxu0
        %v2701 = vunpack.c.l.bf16 %v278
        %v2702 = vunpack.c.l.bf16 %v279
        %v2703 = vunpack.c.l.bf16 %v280
        %v2704 = vunpack.c.l.bf16 %v281
        %v2705 = vunpack.c.l.bf16 %v282
        %v2706 = vunpack.c.l.bf16 %v283
        %v2707 = vunpack.c.l.bf16 %v284
        %v2708 = vunpack.c.l.bf16 %v285
        %v2709 = vunpack.c.l.bf16 %v286
        %v2710 = vunpack.c.l.bf16 %v287
        %v2711 = vunpack.c.l.bf16 %v288
        %v2712 = vunpack.c.l.bf16 %v289
        %v2713 = vunpack.c.l.bf16 %v290
        %v2714 = vunpack.c.l.bf16 %v291
        %v2715 = vunpack.c.l.bf16 %v292
        %v2716 = vunpack.c.l.bf16 %v293
        %v2717 = vunpack.c.l.bf16 %v294
        %v2718 = vunpack.c.l.bf16 %v295
        %v2719 = vunpack.c.l.bf16 %v296
        %v2720 = vunpack.c.l.bf16 %v297
        %v2721 = vunpack.c.l.bf16 %v298
        %v2722 = vunpack.c.l.bf16 %v299
        %v2723 = vunpack.c.l.bf16 %v300
        %v2724 = vunpack.c.l.bf16 %v301
        %v2725 = vunpack.c.l.bf16 %v302
        %v2726 = vunpack.c.l.bf16 %v303
        %v2727 = vunpack.c.l.bf16 %v304
        %v2728 = vunpack.c.l.bf16 %v305
        %v2729 = vunpack.c.l.bf16 %v306
        %v2730 = vunpack.c.l.bf16 %v307
        %v2731 = vunpack.c.l.bf16 %v308
        %v2732 = vunpack.c.l.bf16 %v309
        %v2733 = vadd.f32 %v2575, %v2701
        %v2734 = vadd.f32 %v2578, %v2702
        %v2735 = vadd.f32 %v2583, %v2703
        %v2736 = vadd.f32 %v2586, %v2704
        %v2737 = vadd.f32 %v2591, %v2705
        %v2738 = vadd.f32 %v2594, %v2706
        %v2739 = vadd.f32 %v2599, %v2707
        %v2740 = vadd.f32 %v2602, %v2708
        %v2741 = vadd.f32 %v2607, %v2709
        %v2742 = vadd.f32 %v2610, %v2710
        %v2743 = vadd.f32 %v2615, %v2711
        %v2744 = vadd.f32 %v2618, %v2712
        %v2745 = vadd.f32 %v2623, %v2713
        %v2746 = vadd.f32 %v2626, %v2714
        %v2747 = vadd.f32 %v2631, %v2715
        %v2748 = vadd.f32 %v2634, %v2716
        %v2749 = vadd.f32 %v2639, %v2717
        %v2750 = vadd.f32 %v2642, %v2718
        %v2751 = vadd.f32 %v2647, %v2719
        %v2752 = vadd.f32 %v2650, %v2720
        %v2753 = vadd.f32 %v2655, %v2721
        %v2754 = vadd.f32 %v2658, %v2722
        %v2755 = vadd.f32 %v2663, %v2723
        %v2756 = vadd.f32 %v2666, %v2724
        %v2757 = vadd.f32 %v2671, %v2725
        %v2758 = vadd.f32 %v2674, %v2726
        %v2759 = vadd.f32 %v2679, %v2727
        %v2760 = vadd.f32 %v2682, %v2728
        %v2761 = vadd.f32 %v2687, %v2729
        %v2762 = vadd.f32 %v2690, %v2730
        %v2763 = vadd.f32 %v2695, %v2731
        %v2764 = vadd.f32 %v2698, %v2732
        %v2765 = vmax.f32 %v2733, 0.0
        %v2766 = vmax.f32 %v2734, 0.0
        %v2767 = vmax.f32 %v2735, 0.0
        %v2768 = vmax.f32 %v2736, 0.0
        %v2769 = vmax.f32 %v2737, 0.0
        %v2770 = vmax.f32 %v2738, 0.0
        %v2771 = vmax.f32 %v2739, 0.0
        %v2772 = vmax.f32 %v2740, 0.0
        %v2773 = vmax.f32 %v2741, 0.0
        %v2774 = vmax.f32 %v2742, 0.0
        %v2775 = vmax.f32 %v2743, 0.0
        %v2776 = vmax.f32 %v2744, 0.0
        %v2777 = vmax.f32 %v2745, 0.0
        %v2778 = vmax.f32 %v2746, 0.0
        %v2779 = vmax.f32 %v2747, 0.0
        %v2780 = vmax.f32 %v2748, 0.0
        %v2781 = vmax.f32 %v2749, 0.0
        %v2782 = vmax.f32 %v2750, 0.0
        %v2783 = vmax.f32 %v2751, 0.0
        %v2784 = vmax.f32 %v2752, 0.0
        %v2785 = vmax.f32 %v2753, 0.0
        %v2786 = vmax.f32 %v2754, 0.0
        %v2787 = vmax.f32 %v2755, 0.0
        %v2788 = vmax.f32 %v2756, 0.0
        %v2789 = vmax.f32 %v2757, 0.0
        %v2790 = vmax.f32 %v2758, 0.0
        %v2791 = vmax.f32 %v2759, 0.0
        %v2792 = vmax.f32 %v2760, 0.0
        %v2793 = vmax.f32 %v2761, 0.0
        %v2794 = vmax.f32 %v2762, 0.0
        %v2795 = vmax.f32 %v2763, 0.0
        %v2796 = vmax.f32 %v2764, 0.0
        %2797 = vst [vmem:[%s271] sm:$0xff] %v2765
        %2798 = vst [vmem:[%s271 + $0x8] sm:$0xff] %v2766
        %2799 = vst [vmem:[%s271 + $0x10] sm:$0xff] %v2767
        %2800 = vst [vmem:[%s271 + $0x18] sm:$0xff] %v2768
        %2801 = vst [vmem:[%s271 + $0x20] sm:$0xff] %v2769
        %2802 = vst [vmem:[%s271 + $0x28] sm:$0xff] %v2770
        %2803 = vst [vmem:[%s271 + $0x30] sm:$0xff] %v2771
        %2804 = vst [vmem:[%s271 + $0x38] sm:$0xff] %v2772
        %2805 = vst [vmem:[%s271 + $0x40] sm:$0xff] %v2773
        %2806 = vst [vmem:[%s271 + $0x48] sm:$0xff] %v2774
        %2807 = vst [vmem:[%s271 + $0x50] sm:$0xff] %v2775
        %2808 = vst [vmem:[%s271 + $0x58] sm:$0xff] %v2776
        %2809 = vst [vmem:[%s271 + $0x60] sm:$0xff] %v2777
        %2810 = vst [vmem:[%s271 + $0x68] sm:$0xff] %v2778
        %2811 = vst [vmem:[%s271 + $0x70] sm:$0xff] %v2779
        %2812 = vst [vmem:[%s271 + $0x78] sm:$0xff] %v2780
        %2813 = vst [vmem:[%s271 + $0x80] sm:$0xff] %v2781
        %2814 = vst [vmem:[%s271 + $0x88] sm:$0xff] %v2782
        %2815 = vst [vmem:[%s271 + $0x90] sm:$0xff] %v2783
        %2816 = vst [vmem:[%s271 + $0x98] sm:$0xff] %v2784
        %2817 = vst [vmem:[%s271 + $0xa0] sm:$0xff] %v2785
        %2818 = vst [vmem:[%s271 + $0xa8] sm:$0xff] %v2786
        %2819 = vst [vmem:[%s271 + $0xb0] sm:$0xff] %v2787
        %2820 = vst [vmem:[%s271 + $0xb8] sm:$0xff] %v2788
        %2821 = vst [vmem:[%s271 + $0xc0] sm:$0xff] %v2789
        %2822 = vst [vmem:[%s271 + $0xc8] sm:$0xff] %v2790
        %2823 = vst [vmem:[%s271 + $0xd0] sm:$0xff] %v2791
        %2824 = vst [vmem:[%s271 + $0xd8] sm:$0xff] %v2792
        %2825 = vst [vmem:[%s271 + $0xe0] sm:$0xff] %v2793
        %2826 = vst [vmem:[%s271 + $0xe8] sm:$0xff] %v2794
        %2827 = vst [vmem:[%s271 + $0xf0] sm:$0xff] %v2795
        %2828 = vst [vmem:[%s271 + $0xf8] sm:$0xff] %v2796
        %s2829 = sand.u32 %s181, 1
        %s2830 = scalar_lea.sflag [#allocation4], %s2829
        %s2831 = sand.u32 %s181, 1
        %s2832 = smul.addr %s2831, 256
        %s2833 = scalar_lea.vmem [#allocation3], %s2832
        // Predicated region
        $region49: #{tpu_custom_call.1} parent=47 // pred_check
          %p2834 = pneg %p191
        $region50: #{tpu_custom_call.1} parent=47 // pred_check_branch
          %2836 = sbr.rel (%p2834) target = $region52
        $region51: #{tpu_custom_call.1} parent=47 // pred_region
          %s2838 = ssub.s32 4096, 4096
          %2839 = vsyncadd %s2830, %s2838
          %s2840 = smul.addr %s21, 32
          %s2841 = smul.addr %s2840, 128
          %s2842 = scalar_lea.hbm %s7, %s2841
          %s2843 = sshll.u32 %s2833, 4
          %s2844 = int_to_ptr.vmem [resolvable:$true] %s2843
          %2849 = dma.vmem_to_hbm [thread:$0]  %s2844, 4096, %s2842, %s2830, 128, 128, 8
        $region52: #{tpu_custom_call.1} parent=47 // pred_fallthru
          _
      $region48: #{tpu_custom_call.1} parent=5 // pred_fallthru
        _
      %p2850 = scmp.le.s32.totalorder 2, %s16
      // Predicated region
      $region53: #{tpu_custom_call.1} parent=5 // pred_check
        %p2851 = pneg %p2850
      $region54: #{tpu_custom_call.1} parent=5 // pred_check_branch
        %2853 = sbr.rel (%p2851) target = $region56
      $region55: #{tpu_custom_call.1} parent=5 // pred_region
        %s2854 = ssub.s32 %s16, 2
        // Predicated region
        $region57: #{tpu_custom_call.1} parent=55 // pred_check
          %p2855 = pneg %p197
        $region58: #{tpu_custom_call.1} parent=55 // pred_check_branch
          %2857 = sbr.rel (%p2855) target = $region60
        $region59: #{tpu_custom_call.1} parent=55 // pred_region
          %s2858 = sand.u32 %s182, 1
          %s2859 = scalar_lea.sflag [#allocation4], %s2858
          %s2860 = sand.u32 %s182, 1
          %s2861 = smul.addr %s2860, 256
          %s2862 = scalar_lea.vmem [#allocation3], %s2861
          %2863 = dma.done %s2859, 4096
        $region60: #{tpu_custom_call.1} parent=55 // pred_fallthru
          _
      $region56: #{tpu_custom_call.1} parent=5 // pred_fallthru
        _
    $region6: #{tpu_custom_call.1} parent=1 // loop_footer
      %s20 = sadd.s32 1, %s16
    $region7: #{tpu_custom_call.1} parent=1 // loop_footer_branch
      %15 = sbr.rel target = $region3
    $region8: #{tpu_custom_call.1} parent=1 // loop_exit
      _
    %2864 = vsyncpa [#allocation4], 1
    %s2865 = scalar_lea.sflag [#allocation4], 1
    %2866 = vsyncpa %s2865, 1

</llo_original>
